<compile_context>
chip_gen: v6e
topology: v6e:2x2x1
jax: 0.10.0
libtpu: 0.0.40
codegen_flags: <defaults>
</compile_context>

<pallas_src>
import functools

import numpy as np

import jax
import jax.numpy as jnp
from jax import lax
from jax.experimental import pallas as pl
from jax.experimental.pallas import tpu as pltpu

VMEM_SPEC = pl.BlockSpec(memory_space=pltpu.MemorySpace.VMEM)
SMEM_SPEC = pl.BlockSpec(memory_space=pltpu.MemorySpace.SMEM)
VMEM_LIMIT = 32 * 1024 * 1024      # explicit scoped-VMEM budget (safe on v5e/v6e/v7x)


# --------------------------------------------------------------------------
# Fused trunk: encoder -> additive adapter -> classifier (all VMEM resident)
# --------------------------------------------------------------------------

def _conv_bn_relu(x3, r_ref, s_ref, h_ref, h_out, n):
    """3x3 conv (w-padding folded into banded bf16 weights) + BN(eval) + ReLU.

    x3    : [h_out + 2, n, Gin]   h zero-padded input (VMEM ref or value)
    r_ref : [3, Gin, Gout]        one banded weight matrix per dh
    s/h   : [1, Gout]             BN scale / shift, tiled over w
    out   : [h_out * n, Gout] f32, rows = (h, b), lanes = (w, c_out)
    """
    acc = None
    for dh in range(3):
        lhs = x3[dh:dh + h_out]
        lhs = lhs.reshape(h_out * n, lhs.shape[-1]).astype(jnp.bfloat16)
        d = jnp.dot(lhs, r_ref[dh], preferred_element_type=jnp.float32)
        acc = d if acc is None else acc + d
    return jnp.maximum(acc * s_ref[...] + h_ref[...], 0.0)


def _maxpool2x2(y, h_out, n, hid):
    """2x2 max-pool of [(2*h_out)*n, Wl] (rows=(h,b), lanes=(w,c)).

    h handled by leading-dim slices, w by one shifted lane-slice max.  The
    result stays *uncompacted* along lanes (valid data in every other c-group);
    the stale odd groups are zero-weighted by the next banded matmul, so no
    lane-compaction relayout is ever needed.  Returns [h_out, n, Wl - hid].
    """
    wl = y.shape[-1]
    y = y.reshape(h_out, 2, n, wl)
    yh = jnp.maximum(y[:, 0], y[:, 1])
    return jnp.maximum(yh[:, :, :wl - hid], yh[:, :, hid:])


def _fused_trunk(x_ref, r1_ref, s1_ref, h1_ref, r2_ref, s2_ref, h2_ref,
                 wf_ref, bf_ref, wc_ref, bc_ref, *, hid):
    """Whole _inner_forward on a VMEM-resident [H+2, n, W*C] block.

    Returns (logits [n, n_way], feat [n, feat_dim]) as in-register f32 values.
    """
    Hp, n, _ = x_ref.shape
    H1 = Hp - 2
    H2, H3 = H1 // 2, H1 // 4
    f32, bf16 = jnp.float32, jnp.bfloat16

    # ---- block 1: conv3x3 + BN(eval) + ReLU + maxpool ----
    y1 = _conv_bn_relu(x_ref, r1_ref, s1_ref, h1_ref, H1, n)
    p1 = _maxpool2x2(y1, H2, n, hid)                     # [H2, n, W*hid - hid]

    # h zero-pad via leading-dim concat (w-pad lives in the r2 band, so no
    # pad scratch / border-strip stores are needed at all).
    zrow = jnp.zeros((1, n, p1.shape[-1]), f32)
    x2 = jnp.concatenate([zrow, p1, zrow], axis=0)       # [H2+2, n, ...]

    # ---- block 2 ----
    y2 = _conv_bn_relu(x2, r2_ref, s2_ref, h2_ref, H2, n)
    p2 = _maxpool2x2(y2, H3, n, hid)                     # [H3, n, W2*hid - hid]

    # ---- flatten + additive adapter fused: feat = flat @ (I + W_add) + b ----
    # wf rows are host-side permuted to torch NCHW-flatten order and carry
    # zero rows for the uncompacted pool lanes; feat is lane-dense [n, 128].
    acc = None
    for h in range(H3):
        d = jnp.dot(p2[h].astype(bf16), wf_ref[h], preferred_element_type=f32)
        acc = d if acc is None else acc + d
    feat = acc + bf_ref[...]

    # ---- classifier ----
    logits = jnp.dot(feat.astype(bf16), wc_ref[...],
                     preferred_element_type=f32) + bc_ref[...]
    return logits, feat


# --------------------------------------------------------------------------
# Kernels
# --------------------------------------------------------------------------

def _maml_mark0_kernel(x_ref, r1, s1, h1, r2, s2, h2, wf, bf, wc, bc, onehot_ref,
                       loss_ref, mmd_ref, *, hid, batch, kernel_mul, kernel_num):
    """forward(mark=0): fused inner_forward on [src; tgt] + CE + MMD losses."""
    logits, feat = _fused_trunk(x_ref, r1, s1, h1, r2, s2, h2, wf, bf, wc, bc,
                                hid=hid)
    n, d_feat = feat.shape                      # n = 2 * batch

    # ---- F.cross_entropy(logits[:batch], labels) via zero-padded one-hot ----
    m = jnp.max(logits, axis=1, keepdims=True)
    z = logits - m
    lse = jnp.log(jnp.sum(jnp.exp(z), axis=1, keepdims=True))
    loss_ref[0, 0] = -jnp.sum((z - lse) * onehot_ref[...]) / float(batch)

    # ---- MMD: pairwise L2 from bf16 Gram matmul + direct f32 squared norms ----
    fb = feat.astype(jnp.bfloat16)
    g = lax.dot_general(fb, fb, (((1,), (1,)), ((), ())),
                        preferred_element_type=jnp.float32)           # [n, n]
    ff = feat * feat
    sq_col = jnp.sum(ff, axis=1, keepdims=True)                       # [n, 1]
    sq_row = lax.dot_general(jnp.ones((8, d_feat), jnp.float32), ff,
                             (((1,), (1,)), ((), ())),
                             preferred_element_type=jnp.float32)[0:1, :]  # [1, n]
    ri = lax.broadcasted_iota(jnp.int32, (n, n), 0)
    ci = lax.broadcasted_iota(jnp.int32, (n, n), 1)
    l2 = jnp.maximum(sq_col + sq_row - 2.0 * g, 0.0)
    l2 = jnp.where(ri == ci, 0.0, l2)           # exact-zero diagonal, as in torch

    bw = jnp.sum(l2) / float(n * n - n)
    bw = bw / (kernel_mul ** (kernel_num // 2))
    inv_bw = 1.0 / bw                           # one scalar divide
    kval = jnp.zeros_like(l2)
    for i in range(kernel_num):
        kval = kval + jnp.exp(l2 * (-inv_bw * (1.0 / kernel_mul ** i)))
    sign = jnp.where((ri < batch) == (ci < batch), 1.0, -1.0)          # XX+YY-XY-YX
    mmd_ref[0, 0] = jnp.sum(kval * sign) / float(batch * batch)


def _maml_mark2_kernel(x_ref, r1, s1, h1, r2, s2, h2, wf, bf, wc, bc,
                       logits_ref, feat_ref, *, hid):
    """forward(mark=2): fused inner_forward for one batch block."""
    logits, feat = _fused_trunk(x_ref, r1, s1, h1, r2, s2, h2, wf, bf, wc, bc,
                                hid=hid)
    logits_ref[...] = logits
    feat_ref[...] = feat


# --------------------------------------------------------------------------
# Host-side layout / parameter preparation (cheap glue, runs inside jit)
# --------------------------------------------------------------------------

def _round_up(x, m):
    return (x + m - 1) // m * m


def _conv_band(width, groups, stride):
    """band[dw, g, w] = 1 iff input group g == stride*(w + dw - 1); the implicit
    zero padding in w is handled by simply omitting out-of-range taps."""
    band = np.zeros((3, groups, width), np.float32)
    for dw in range(3):
        for w in range(width):
            wp = w + dw - 1
            if 0 <= wp < width:
                band[dw, stride * wp, w] = 1.0
    return band


def _prep_input(x_nchw, n_rows, cin_pad):
    """NCHW -> [H+2, n_rows, W*cin_pad] f32; zero-padded in h / batch / channels."""
    x = jnp.transpose(x_nchw.astype(jnp.float32), (2, 0, 3, 1))        # [H, N, W, C]
    H, N, W, C = x.shape
    x = jnp.pad(x, ((1, 1), (0, n_rows - N), (0, 0), (0, cin_pad - C)))
    return x.reshape(H + 2, n_rows, W * cin_pad)


def _prep_params(p, H, W):
    """Reshape / band / permute parameters into the kernel's lane-dense layouts.

    Runs under jit: the numpy band and permutation constants are baked in at
    trace time, the eye-add is folded into a constant permutation matrix, and
    all MXU operands are cast to bf16 once.
    """
    cin = p["enc_w1"].shape[0] // 9
    hid = p["enc_w1"].shape[1]
    cp = _round_up(cin, 8)
    H2, W2 = H // 2, W // 2
    H3, W3 = H2 // 2, W2 // 2
    feat_dim = p["add_w"].shape[0]
    assert feat_dim == hid * H3 * W3
    bf16 = jnp.bfloat16

    # conv1: banded weights [3(dh), W*cp, W*hid]
    w1 = jnp.pad(p["enc_w1"].reshape(3, 3, cin, hid),
                 ((0, 0), (0, 0), (0, cp - cin), (0, 0)))
    r1 = jnp.einsum('xgw,dxio->dgiwo', _conv_band(W, W, 1), w1)
    r1 = r1.reshape(3, W * cp, W * hid).astype(bf16)

    # conv2 reads the *uncompacted* pooled layout: stride-2 band, stale groups 0
    w2 = p["enc_w2"].reshape(3, 3, hid, hid)
    r2 = jnp.einsum('xgw,dxio->dgiwo', _conv_band(W2, 2 * W2 - 1, 2), w2)
    r2 = r2.reshape(3, (2 * W2 - 1) * hid, W2 * hid).astype(bf16)

    # BN (eval) scale / shift tiled over w to match the (w, c) lane layout
    s1 = jnp.tile(p["enc_scale1"], (1, W))
    h1 = jnp.tile(p["enc_shift1"], (1, W))
    s2 = jnp.tile(p["enc_scale2"], (1, W2))
    h2 = jnp.tile(p["enc_shift2"], (1, W2))

    # adapter: rows of (I + W_add) permuted so feat columns follow torch's
    # NCHW-flatten ordering, with zero rows interleaved for the uncompacted
    # pooled lanes.  Identity folded into a static numpy permutation matrix.
    k = np.arange(feat_dim)
    c, w, h = k % hid, (k // hid) % W3, k // (hid * W3)
    perm = c * (H3 * W3) + h * W3 + w
    pmat = np.zeros((feat_dim, feat_dim), np.float32)
    pmat[np.arange(feat_dim), perm] = 1.0
    wmat = jnp.asarray(pmat) + p["add_w"][perm, :]            # (I + W_add)[perm]
    wmat = wmat.reshape(H3, W3, hid, feat_dim)
    wf = jnp.stack([wmat, jnp.zeros_like(wmat)], axis=2)
    wf = wf.reshape(H3, 2 * W3, hid, feat_dim)[:, :2 * W3 - 1]
    wf = wf.reshape(H3, (2 * W3 - 1) * hid, feat_dim).astype(bf16)

    return (r1, s1, h1, r2, s2, h2, wf, p["add_b"],
            p["cls_w"].astype(bf16), p["cls_b"])


# --------------------------------------------------------------------------
# Public forward functions
# --------------------------------------------------------------------------

@functools.partial(jax.jit, static_argnames=("kernel_mul", "kernel_num"))
def maml_forward_mark0(src_data, src_label, tgt_data, tgt_label, params,
                       kernel_mul=2.0, kernel_num=5):
    """MAML.forward(..., mark=0): returns (cross_entropy_loss, mmd_loss)."""
    del tgt_label                                   # unused, as in the reference
    B, _, H, W = src_data.shape
    n = 2 * B
    assert n % 8 == 0, "mark==0 path expects 2*batch to be a multiple of 8"
    hid = params["enc_w1"].shape[1]
    n_way = params["cls_w"].shape[1]

    weights = _prep_params(params, H, W)
    cp = weights[0].shape[1] // W
    x = _prep_input(jnp.concatenate([src_data, tgt_data], axis=0), n, cp)
    onehot = jax.nn.one_hot(src_label, n_way, dtype=jnp.float32)
    onehot = jnp.pad(onehot, ((0, n - B), (0, 0)))  # tgt rows contribute 0 to CE

    kernel = functools.partial(_maml_mark0_kernel, hid=hid, batch=B,
                               kernel_mul=kernel_mul, kernel_num=kernel_num)
    # TODO(synk): the CE + MMD losses couple the src/tgt halves, so this path
    # stays a single program; at production sizes split trunk and losses into
    # two pallas_calls with a batch grid to use both v7x TensorCores.
    loss, mmd = pl.pallas_call(
        kernel,
        out_shape=(jax.ShapeDtypeStruct((1, 1), jnp.float32),
                   jax.ShapeDtypeStruct((1, 1), jnp.float32)),
        in_specs=[VMEM_SPEC] * 12,
        out_specs=(SMEM_SPEC, SMEM_SPEC),
        compiler_params=pltpu.CompilerParams(vmem_limit_bytes=VMEM_LIMIT),
    )(x, *weights, onehot)
    return loss[0, 0], mmd[0, 0]


@jax.jit
def maml_forward_mark2(src_data, params):
    """MAML.forward(..., mark=2): returns (logits, feat)."""
    B, _, H, W = src_data.shape
    n_pad = _round_up(B, 8)
    nb = n_pad // 8
    hid = params["enc_w1"].shape[1]
    feat_dim = params["add_w"].shape[0]
    n_way = params["cls_w"].shape[1]

    weights = _prep_params(params, H, W)
    cp = weights[0].shape[1] // W
    x = _prep_input(src_data, n_pad, cp)            # [H+2, n_pad, W*cp]
    Hp, _, lanes = x.shape

    def _pin(arr):                                  # weights: same block every step
        zeros = (0,) * arr.ndim
        return pl.BlockSpec(arr.shape, lambda i, _z=zeros: _z)

    kernel = functools.partial(_maml_mark2_kernel, hid=hid)
    logits, feat = pl.pallas_call(
        kernel,
        out_shape=(jax.ShapeDtypeStruct((n_pad, n_way), jnp.float32),
                   jax.ShapeDtypeStruct((n_pad, feat_dim), jnp.float32)),
        grid=(nb,),
        in_specs=[pl.BlockSpec((Hp, 8, lanes), lambda i: (0, i, 0))]
                 + [_pin(wgt) for wgt in weights],
        out_specs=(pl.BlockSpec((8, n_way), lambda i: (i, 0)),
                   pl.BlockSpec((8, feat_dim), lambda i: (i, 0))),
        compiler_params=pltpu.CompilerParams(
            dimension_semantics=("parallel",),      # megacore / v7x dual-TC
            vmem_limit_bytes=VMEM_LIMIT),
    )(x, *weights)
    return logits[:B], feat[:B]


# --------------------------------------------------------------------------
# Parameter construction (same shapes / semantics as before)
# --------------------------------------------------------------------------

def init_params(key, c_in=3, hid=8, feat_dim=None, n_way=5):
    if feat_dim is None:
        feat_dim = hid * 4 * 4
    ks = jax.random.split(key, 4)
    eps = 1e-5
    return {
        # encoder block 1: conv3x3 (c_in -> hid), BN(eval), ReLU
        "enc_w1": jax.random.normal(ks[0], (9 * c_in, hid), jnp.float32) * 0.1,
        "enc_scale1": jnp.ones((1, hid), jnp.float32) / jnp.sqrt(1.0 + eps),
        "enc_shift1": jnp.zeros((1, hid), jnp.float32),
        # encoder block 2: conv3x3 (hid -> hid), BN(eval), ReLU
        "enc_w2": jax.random.normal(ks[1], (9 * hid, hid), jnp.float32) * 0.1,
        "enc_scale2": jnp.ones((1, hid), jnp.float32) / jnp.sqrt(1.0 + eps),
        "enc_shift2": jnp.zeros((1, hid), jnp.float32),
        # add: additive linear adapter on the flattened feature
        "add_w": (jax.random.normal(ks[2], (feat_dim, feat_dim), jnp.float32)
                  * (1.0 / jnp.sqrt(feat_dim))),
        "add_b": jnp.zeros((1, feat_dim), jnp.float32),
        # classifier: Linear(feat_dim, n_way)
        "cls_w": jax.random.normal(ks[3], (feat_dim, n_way), jnp.float32) * 0.1,
        "cls_b": jnp.zeros((1, n_way), jnp.float32),
    }


# --------------------------------------------------------------------------
# Pure-JAX references (torch-faithful semantics) for correctness checks
# --------------------------------------------------------------------------

def im2col_3x3(x_nhwc):
    B, H, W, C = x_nhwc.shape
    xp = jnp.pad(x_nhwc, ((0, 0), (1, 1), (1, 1), (0, 0)))
    cols = [xp[:, dh:dh + H, dw:dw + W, :] for dh in range(3) for dw in range(3)]
    return jnp.stack(cols, axis=3).reshape(B * H * W, 9 * C)


def maxpool2x2(x_nhwc):
    B, H, W, C = x_nhwc.shape
    return jnp.max(x_nhwc.reshape(B, H // 2, 2, W // 2, 2, C), axis=(2, 4))


def _ref_inner_forward(x_nchw, p, use_bf16):
    """Torch-faithful _inner_forward.  use_bf16=True mirrors the kernel's MXU
    precision policy (bf16 operands, f32 accumulation); False is full f32."""
    if use_bf16:
        def dot(a, b):
            return jnp.dot(a.astype(jnp.bfloat16), b.astype(jnp.bfloat16),
                           preferred_element_type=jnp.float32)
    else:
        def dot(a, b):
            return jnp.dot(a, b, precision=lax.Precision.HIGHEST)

    x = jnp.transpose(x_nchw, (0, 2, 3, 1)).astype(jnp.float32)
    for i in (1, 2):
        B, H, W, _ = x.shape
        y = dot(im2col_3x3(x), p[f"enc_w{i}"])
        y = jnp.maximum(y * p[f"enc_scale{i}"] + p[f"enc_shift{i}"], 0.0)
        x = maxpool2x2(y.reshape(B, H, W, -1))
    flat = jnp.transpose(x, (0, 3, 1, 2)).reshape(x.shape[0], -1)   # NCHW flatten
    if use_bf16:
        eye = jnp.eye(flat.shape[1], dtype=jnp.float32)
        feat = dot(flat, eye + p["add_w"]) + p["add_b"]
    else:
        feat = flat + (dot(flat, p["add_w"]) + p["add_b"])
    logits = dot(feat, p["cls_w"]) + p["cls_b"]
    return logits, feat


def _ref_cross_entropy(logits, labels):
    logp = jax.nn.log_softmax(logits, axis=1)
    return -jnp.mean(logp[jnp.arange(logits.shape[0]), labels])


def _ref_mmd(src, tgt, kernel_mul=2.0, kernel_num=5):
    b = src.shape[0]
    total = jnp.concatenate([src, tgt], axis=0)
    n = total.shape[0]
    diff = total[None, :, :] - total[:, None, :]
    l2 = jnp.sum(diff * diff, axis=2)
    bw = jnp.sum(l2) / (n * n - n) / (kernel_mul ** (kernel_num // 2))
    k = sum(jnp.exp(-l2 / (bw * kernel_mul ** i)) for i in range(kernel_num))
    return jnp.mean(k[:b, :b] + k[b:, b:] - k[:b, b:] - k[b:, :b])


# --------------------------------------------------------------------------

if __name__ == "__main__":
    key = jax.random.PRNGKey(0)
    k_param, k_src, k_tgt, k_ys, k_yt = jax.random.split(key, 5)

    B, C, H, W, HID, NWAY = 4, 3, 16, 16, 8, 5
    params = init_params(k_param, c_in=C, hid=HID, n_way=NWAY)

    src_data = jax.random.normal(k_src, (B, C, H, W), jnp.float32)
    tgt_data = jax.random.normal(k_tgt, (B, C, H, W), jnp.float32)
    src_label = jax.random.randint(k_ys, (B,), 0, NWAY, jnp.int32)
    tgt_label = jax.random.randint(k_yt, (B,), 0, NWAY, jnp.int32)

    # mark == 0 path: (cross_entropy, mmd) losses, single fused kernel
    loss, mmd_loss = maml_forward_mark0(src_data, src_label,
                                        tgt_data, tgt_label, params)
    loss, mmd_loss = jax.block_until_ready((loss, mmd_loss))

    # mark == 2 path: (logits, feat), fused kernel with a parallel batch grid
    logits, feat = maml_forward_mark2(src_data, params)
    logits, feat = jax.block_until_ready((logits, feat))

    # Matched-precision reference (same bf16-MXU policy): tight implementation check.
    logits_m, feat_src_m = _ref_inner_forward(src_data, params, use_bf16=True)
    _, feat_tgt_m = _ref_inner_forward(tgt_data, params, use_bf16=True)
    loss_m = _ref_cross_entropy(logits_m, src_label)
    mmd_m = _ref_mmd(feat_src_m, feat_tgt_m)

    # Full-f32 torch-faithful reference: loose semantic sanity check (the kernel
    # deliberately uses single-pass bf16 MXU matmuls per the perf review).
    logits_f, feat_src_f = _ref_inner_forward(src_data, params, use_bf16=False)
    _, feat_tgt_f = _ref_inner_forward(tgt_data, params, use_bf16=False)
    loss_f = _ref_cross_entropy(logits_f, src_label)
    mmd_f = _ref_mmd(feat_src_f, feat_tgt_f)

    assert logits.shape == (B, NWAY) and feat.shape == (B, HID * 4 * 4)
    assert jnp.allclose(logits, logits_m, atol=2e-3, rtol=2e-3)
    assert jnp.allclose(feat, feat_src_m, atol=2e-3, rtol=2e-3)
    assert jnp.allclose(loss, loss_m, atol=2e-3, rtol=2e-3)
    assert jnp.allclose(mmd_loss, mmd_m, atol=3e-2, rtol=3e-2)
    assert jnp.allclose(logits, logits_f, atol=6e-2, rtol=1e-1)
    assert jnp.allclose(feat, feat_src_f, atol=5e-2, rtol=1e-1)
    assert jnp.allclose(loss, loss_f, atol=8e-2, rtol=5e-2)
    assert jnp.allclose(mmd_loss, mmd_f, atol=1.5e-1, rtol=1e-1)

    print("KERNEL_OK")
</pallas_src>

<mosaic_0001>
module attributes {stable_mosaic.version = 11 : i64} {
  func.func @_maml_mark0_kernel(%arg0: memref<18x8x128xf32, #tpu.memory_space<vmem>>, %arg1: memref<3x128x128xbf16, #tpu.memory_space<vmem>>, %arg2: memref<1x128xf32, #tpu.memory_space<vmem>>, %arg3: memref<1x128xf32, #tpu.memory_space<vmem>>, %arg4: memref<3x120x64xbf16, #tpu.memory_space<vmem>>, %arg5: memref<1x64xf32, #tpu.memory_space<vmem>>, %arg6: memref<1x64xf32, #tpu.memory_space<vmem>>, %arg7: memref<4x56x128xbf16, #tpu.memory_space<vmem>>, %arg8: memref<1x128xf32, #tpu.memory_space<vmem>>, %arg9: memref<128x5xbf16, #tpu.memory_space<vmem>>, %arg10: memref<1x5xf32, #tpu.memory_space<vmem>>, %arg11: memref<8x5xf32, #tpu.memory_space<vmem>>, %arg12: memref<1x1xf32, #tpu.memory_space<smem>>, %arg13: memref<1x1xf32, #tpu.memory_space<smem>>) attributes {dimension_semantics = [], scalar_prefetch = 0 : i64, scratch_operands = 0 : i64, tpu.core_type = #tpu.core_type<tc>} {
    %c0 = arith.constant 0 : index
    %c0_0 = arith.constant 0 : index
    %c0_1 = arith.constant 0 : index
    %0 = vector.load %arg0[%c0, %c0_0, %c0_1] : memref<18x8x128xf32, #tpu.memory_space<vmem>>, vector<16x8x128xf32>
    %1 = vector.shape_cast %0 : vector<16x8x128xf32> to vector<128x128xf32>
    %2 = arith.truncf %1 : vector<128x128xf32> to vector<128x128xbf16>
    %c0_2 = arith.constant 0 : index
    %c0_3 = arith.constant 0 : index
    %c0_4 = arith.constant 0 : index
    %3 = vector.load %arg1[%c0_2, %c0_3, %c0_4] : memref<3x128x128xbf16, #tpu.memory_space<vmem>>, vector<1x128x128xbf16>
    %4 = vector.shape_cast %3 : vector<1x128x128xbf16> to vector<128x128xbf16>
    %cst = arith.constant dense<0.000000e+00> : vector<128x128xf32>
    %5 = tpu.matmul %2, %4, %cst {dimension_numbers = #tpu.dot_dimension_numbers<[1], [0], [0], [1], [0, 0, 1, 1], [], []>} : vector<128x128xbf16>, vector<128x128xbf16>, vector<128x128xf32> -> vector<128x128xf32>
    %c1 = arith.constant 1 : index
    %c0_5 = arith.constant 0 : index
    %c0_6 = arith.constant 0 : index
    %6 = vector.load %arg0[%c1, %c0_5, %c0_6] : memref<18x8x128xf32, #tpu.memory_space<vmem>>, vector<16x8x128xf32>
    %7 = vector.shape_cast %6 : vector<16x8x128xf32> to vector<128x128xf32>
    %8 = arith.truncf %7 : vector<128x128xf32> to vector<128x128xbf16>
    %c1_7 = arith.constant 1 : index
    %c0_8 = arith.constant 0 : index
    %c0_9 = arith.constant 0 : index
    %9 = vector.load %arg1[%c1_7, %c0_8, %c0_9] : memref<3x128x128xbf16, #tpu.memory_space<vmem>>, vector<1x128x128xbf16>
    %10 = vector.shape_cast %9 : vector<1x128x128xbf16> to vector<128x128xbf16>
    %cst_10 = arith.constant dense<0.000000e+00> : vector<128x128xf32>
    %11 = tpu.matmul %8, %10, %cst_10 {dimension_numbers = #tpu.dot_dimension_numbers<[1], [0], [0], [1], [0, 0, 1, 1], [], []>} : vector<128x128xbf16>, vector<128x128xbf16>, vector<128x128xf32> -> vector<128x128xf32>
    %12 = arith.addf %5, %11 : vector<128x128xf32>
    %c2 = arith.constant 2 : index
    %c0_11 = arith.constant 0 : index
    %c0_12 = arith.constant 0 : index
    %13 = vector.load %arg0[%c2, %c0_11, %c0_12] : memref<18x8x128xf32, #tpu.memory_space<vmem>>, vector<16x8x128xf32>
    %14 = vector.shape_cast %13 : vector<16x8x128xf32> to vector<128x128xf32>
    %15 = arith.truncf %14 : vector<128x128xf32> to vector<128x128xbf16>
    %c2_13 = arith.constant 2 : index
    %c0_14 = arith.constant 0 : index
    %c0_15 = arith.constant 0 : index
    %16 = vector.load %arg1[%c2_13, %c0_14, %c0_15] : memref<3x128x128xbf16, #tpu.memory_space<vmem>>, vector<1x128x128xbf16>
    %17 = vector.shape_cast %16 : vector<1x128x128xbf16> to vector<128x128xbf16>
    %cst_16 = arith.constant dense<0.000000e+00> : vector<128x128xf32>
    %18 = tpu.matmul %15, %17, %cst_16 {dimension_numbers = #tpu.dot_dimension_numbers<[1], [0], [0], [1], [0, 0, 1, 1], [], []>} : vector<128x128xbf16>, vector<128x128xbf16>, vector<128x128xf32> -> vector<128x128xf32>
    %19 = arith.addf %12, %18 : vector<128x128xf32>
    %c0_17 = arith.constant 0 : index
    %c0_18 = arith.constant 0 : index
    %20 = vector.load %arg2[%c0_17, %c0_18] : memref<1x128xf32, #tpu.memory_space<vmem>>, vector<1x128xf32>
    %21 = vector.broadcast %20 : vector<1x128xf32> to vector<128x128xf32>
    %22 = arith.mulf %19, %21 : vector<128x128xf32>
    %c0_19 = arith.constant 0 : index
    %c0_20 = arith.constant 0 : index
    %23 = vector.load %arg3[%c0_19, %c0_20] : memref<1x128xf32, #tpu.memory_space<vmem>>, vector<1x128xf32>
    %24 = vector.broadcast %23 : vector<1x128xf32> to vector<128x128xf32>
    %25 = arith.addf %22, %24 : vector<128x128xf32>
    %cst_21 = arith.constant 0.000000e+00 : f32
    %26 = vector.broadcast %cst_21 : f32 to vector<128x128xf32>
    %27 = arith.maximumf %25, %26 : vector<128x128xf32>
    %28 = vector.shape_cast %27 : vector<128x128xf32> to vector<8x2x8x128xf32>
    %29 = vector.extract_strided_slice %28 {offsets = [0, 0, 0, 0], sizes = [8, 1, 8, 128], strides = [1, 1, 1, 1]} : vector<8x2x8x128xf32> to vector<8x1x8x128xf32>
    %30 = vector.shape_cast %29 : vector<8x1x8x128xf32> to vector<8x8x128xf32>
    %31 = vector.extract_strided_slice %28 {offsets = [0, 1, 0, 0], sizes = [8, 1, 8, 128], strides = [1, 1, 1, 1]} : vector<8x2x8x128xf32> to vector<8x1x8x128xf32>
    %32 = vector.shape_cast %31 : vector<8x1x8x128xf32> to vector<8x8x128xf32>
    %33 = arith.maximumf %30, %32 : vector<8x8x128xf32>
    %34 = vector.extract_strided_slice %33 {offsets = [0, 0, 0], sizes = [8, 8, 120], strides = [1, 1, 1]} : vector<8x8x128xf32> to vector<8x8x120xf32>
    %35 = vector.extract_strided_slice %33 {offsets = [0, 0, 8], sizes = [8, 8, 120], strides = [1, 1, 1]} : vector<8x8x128xf32> to vector<8x8x120xf32>
    %36 = arith.maximumf %34, %35 : vector<8x8x120xf32>
    %cst_22 = arith.constant 0.000000e+00 : f32
    %37 = vector.broadcast %cst_22 : f32 to vector<1x8x120xf32>
    %38 = tpu.concatenate %37, %36, %37 in 0 : vector<1x8x120xf32>, vector<8x8x120xf32>, vector<1x8x120xf32> -> vector<10x8x120xf32>
    %39 = vector.extract_strided_slice %38 {offsets = [0, 0, 0], sizes = [8, 8, 120], strides = [1, 1, 1]} : vector<10x8x120xf32> to vector<8x8x120xf32>
    %40 = vector.shape_cast %39 : vector<8x8x120xf32> to vector<64x120xf32>
    %41 = arith.truncf %40 : vector<64x120xf32> to vector<64x120xbf16>
    %c0_23 = arith.constant 0 : index
    %c0_24 = arith.constant 0 : index
    %c0_25 = arith.constant 0 : index
    %42 = vector.load %arg4[%c0_23, %c0_24, %c0_25] : memref<3x120x64xbf16, #tpu.memory_space<vmem>>, vector<1x120x64xbf16>
    %43 = vector.shape_cast %42 : vector<1x120x64xbf16> to vector<120x64xbf16>
    %cst_26 = arith.constant dense<0.000000e+00> : vector<64x64xf32>
    %44 = tpu.matmul %41, %43, %cst_26 {dimension_numbers = #tpu.dot_dimension_numbers<[1], [0], [0], [1], [0, 0, 1, 1], [], []>} : vector<64x120xbf16>, vector<120x64xbf16>, vector<64x64xf32> -> vector<64x64xf32>
    %45 = vector.extract_strided_slice %38 {offsets = [1, 0, 0], sizes = [8, 8, 120], strides = [1, 1, 1]} : vector<10x8x120xf32> to vector<8x8x120xf32>
    %46 = vector.shape_cast %45 : vector<8x8x120xf32> to vector<64x120xf32>
    %47 = arith.truncf %46 : vector<64x120xf32> to vector<64x120xbf16>
    %c1_27 = arith.constant 1 : index
    %c0_28 = arith.constant 0 : index
    %c0_29 = arith.constant 0 : index
    %48 = vector.load %arg4[%c1_27, %c0_28, %c0_29] : memref<3x120x64xbf16, #tpu.memory_space<vmem>>, vector<1x120x64xbf16>
    %49 = vector.shape_cast %48 : vector<1x120x64xbf16> to vector<120x64xbf16>
    %cst_30 = arith.constant dense<0.000000e+00> : vector<64x64xf32>
    %50 = tpu.matmul %47, %49, %cst_30 {dimension_numbers = #tpu.dot_dimension_numbers<[1], [0], [0], [1], [0, 0, 1, 1], [], []>} : vector<64x120xbf16>, vector<120x64xbf16>, vector<64x64xf32> -> vector<64x64xf32>
    %51 = arith.addf %44, %50 : vector<64x64xf32>
    %52 = vector.extract_strided_slice %38 {offsets = [2, 0, 0], sizes = [8, 8, 120], strides = [1, 1, 1]} : vector<10x8x120xf32> to vector<8x8x120xf32>
    %53 = vector.shape_cast %52 : vector<8x8x120xf32> to vector<64x120xf32>
    %54 = arith.truncf %53 : vector<64x120xf32> to vector<64x120xbf16>
    %c2_31 = arith.constant 2 : index
    %c0_32 = arith.constant 0 : index
    %c0_33 = arith.constant 0 : index
    %55 = vector.load %arg4[%c2_31, %c0_32, %c0_33] : memref<3x120x64xbf16, #tpu.memory_space<vmem>>, vector<1x120x64xbf16>
    %56 = vector.shape_cast %55 : vector<1x120x64xbf16> to vector<120x64xbf16>
    %cst_34 = arith.constant dense<0.000000e+00> : vector<64x64xf32>
    %57 = tpu.matmul %54, %56, %cst_34 {dimension_numbers = #tpu.dot_dimension_numbers<[1], [0], [0], [1], [0, 0, 1, 1], [], []>} : vector<64x120xbf16>, vector<120x64xbf16>, vector<64x64xf32> -> vector<64x64xf32>
    %58 = arith.addf %51, %57 : vector<64x64xf32>
    %c0_35 = arith.constant 0 : index
    %c0_36 = arith.constant 0 : index
    %59 = vector.load %arg5[%c0_35, %c0_36] : memref<1x64xf32, #tpu.memory_space<vmem>>, vector<1x64xf32>
    %60 = vector.broadcast %59 : vector<1x64xf32> to vector<64x64xf32>
    %61 = arith.mulf %58, %60 : vector<64x64xf32>
    %c0_37 = arith.constant 0 : index
    %c0_38 = arith.constant 0 : index
    %62 = vector.load %arg6[%c0_37, %c0_38] : memref<1x64xf32, #tpu.memory_space<vmem>>, vector<1x64xf32>
    %63 = vector.broadcast %62 : vector<1x64xf32> to vector<64x64xf32>
    %64 = arith.addf %61, %63 : vector<64x64xf32>
    %cst_39 = arith.constant 0.000000e+00 : f32
    %65 = vector.broadcast %cst_39 : f32 to vector<64x64xf32>
    %66 = arith.maximumf %64, %65 : vector<64x64xf32>
    %67 = vector.shape_cast %66 : vector<64x64xf32> to vector<4x2x8x64xf32>
    %68 = vector.extract_strided_slice %67 {offsets = [0, 0, 0, 0], sizes = [4, 1, 8, 64], strides = [1, 1, 1, 1]} : vector<4x2x8x64xf32> to vector<4x1x8x64xf32>
    %69 = vector.shape_cast %68 : vector<4x1x8x64xf32> to vector<4x8x64xf32>
    %70 = vector.extract_strided_slice %67 {offsets = [0, 1, 0, 0], sizes = [4, 1, 8, 64], strides = [1, 1, 1, 1]} : vector<4x2x8x64xf32> to vector<4x1x8x64xf32>
    %71 = vector.shape_cast %70 : vector<4x1x8x64xf32> to vector<4x8x64xf32>
    %72 = arith.maximumf %69, %71 : vector<4x8x64xf32>
    %73 = vector.extract_strided_slice %72 {offsets = [0, 0, 0], sizes = [4, 8, 56], strides = [1, 1, 1]} : vector<4x8x64xf32> to vector<4x8x56xf32>
    %74 = vector.extract_strided_slice %72 {offsets = [0, 0, 8], sizes = [4, 8, 56], strides = [1, 1, 1]} : vector<4x8x64xf32> to vector<4x8x56xf32>
    %75 = arith.maximumf %73, %74 : vector<4x8x56xf32>
    %76 = vector.extract_strided_slice %75 {offsets = [0, 0, 0], sizes = [1, 8, 56], strides = [1, 1, 1]} : vector<4x8x56xf32> to vector<1x8x56xf32>
    %77 = vector.shape_cast %76 : vector<1x8x56xf32> to vector<8x56xf32>
    %78 = arith.truncf %77 : vector<8x56xf32> to vector<8x56xbf16>
    %c0_40 = arith.constant 0 : index
    %c0_41 = arith.constant 0 : index
    %c0_42 = arith.constant 0 : index
    %79 = vector.load %arg7[%c0_40, %c0_41, %c0_42] : memref<4x56x128xbf16, #tpu.memory_space<vmem>>, vector<1x56x128xbf16>
    %80 = vector.shape_cast %79 : vector<1x56x128xbf16> to vector<56x128xbf16>
    %cst_43 = arith.constant dense<0.000000e+00> : vector<8x128xf32>
    %81 = tpu.matmul %78, %80, %cst_43 {dimension_numbers = #tpu.dot_dimension_numbers<[1], [0], [0], [1], [0, 0, 1, 1], [], []>} : vector<8x56xbf16>, vector<56x128xbf16>, vector<8x128xf32> -> vector<8x128xf32>
    %82 = vector.extract_strided_slice %75 {offsets = [1, 0, 0], sizes = [1, 8, 56], strides = [1, 1, 1]} : vector<4x8x56xf32> to vector<1x8x56xf32>
    %83 = vector.shape_cast %82 : vector<1x8x56xf32> to vector<8x56xf32>
    %84 = arith.truncf %83 : vector<8x56xf32> to vector<8x56xbf16>
    %c1_44 = arith.constant 1 : index
    %c0_45 = arith.constant 0 : index
    %c0_46 = arith.constant 0 : index
    %85 = vector.load %arg7[%c1_44, %c0_45, %c0_46] : memref<4x56x128xbf16, #tpu.memory_space<vmem>>, vector<1x56x128xbf16>
    %86 = vector.shape_cast %85 : vector<1x56x128xbf16> to vector<56x128xbf16>
    %cst_47 = arith.constant dense<0.000000e+00> : vector<8x128xf32>
    %87 = tpu.matmul %84, %86, %cst_47 {dimension_numbers = #tpu.dot_dimension_numbers<[1], [0], [0], [1], [0, 0, 1, 1], [], []>} : vector<8x56xbf16>, vector<56x128xbf16>, vector<8x128xf32> -> vector<8x128xf32>
    %88 = arith.addf %81, %87 : vector<8x128xf32>
    %89 = vector.extract_strided_slice %75 {offsets = [2, 0, 0], sizes = [1, 8, 56], strides = [1, 1, 1]} : vector<4x8x56xf32> to vector<1x8x56xf32>
    %90 = vector.shape_cast %89 : vector<1x8x56xf32> to vector<8x56xf32>
    %91 = arith.truncf %90 : vector<8x56xf32> to vector<8x56xbf16>
    %c2_48 = arith.constant 2 : index
    %c0_49 = arith.constant 0 : index
    %c0_50 = arith.constant 0 : index
    %92 = vector.load %arg7[%c2_48, %c0_49, %c0_50] : memref<4x56x128xbf16, #tpu.memory_space<vmem>>, vector<1x56x128xbf16>
    %93 = vector.shape_cast %92 : vector<1x56x128xbf16> to vector<56x128xbf16>
    %cst_51 = arith.constant dense<0.000000e+00> : vector<8x128xf32>
    %94 = tpu.matmul %91, %93, %cst_51 {dimension_numbers = #tpu.dot_dimension_numbers<[1], [0], [0], [1], [0, 0, 1, 1], [], []>} : vector<8x56xbf16>, vector<56x128xbf16>, vector<8x128xf32> -> vector<8x128xf32>
    %95 = arith.addf %88, %94 : vector<8x128xf32>
    %96 = vector.extract_strided_slice %75 {offsets = [3, 0, 0], sizes = [1, 8, 56], strides = [1, 1, 1]} : vector<4x8x56xf32> to vector<1x8x56xf32>
    %97 = vector.shape_cast %96 : vector<1x8x56xf32> to vector<8x56xf32>
    %98 = arith.truncf %97 : vector<8x56xf32> to vector<8x56xbf16>
    %c3 = arith.constant 3 : index
    %c0_52 = arith.constant 0 : index
    %c0_53 = arith.constant 0 : index
    %99 = vector.load %arg7[%c3, %c0_52, %c0_53] : memref<4x56x128xbf16, #tpu.memory_space<vmem>>, vector<1x56x128xbf16>
    %100 = vector.shape_cast %99 : vector<1x56x128xbf16> to vector<56x128xbf16>
    %cst_54 = arith.constant dense<0.000000e+00> : vector<8x128xf32>
    %101 = tpu.matmul %98, %100, %cst_54 {dimension_numbers = #tpu.dot_dimension_numbers<[1], [0], [0], [1], [0, 0, 1, 1], [], []>} : vector<8x56xbf16>, vector<56x128xbf16>, vector<8x128xf32> -> vector<8x128xf32>
    %102 = arith.addf %95, %101 : vector<8x128xf32>
    %c0_55 = arith.constant 0 : index
    %c0_56 = arith.constant 0 : index
    %103 = vector.load %arg8[%c0_55, %c0_56] : memref<1x128xf32, #tpu.memory_space<vmem>>, vector<1x128xf32>
    %104 = vector.broadcast %103 : vector<1x128xf32> to vector<8x128xf32>
    %105 = arith.addf %102, %104 : vector<8x128xf32>
    %106 = arith.truncf %105 : vector<8x128xf32> to vector<8x128xbf16>
    %c0_57 = arith.constant 0 : index
    %c0_58 = arith.constant 0 : index
    %107 = vector.load %arg9[%c0_57, %c0_58] : memref<128x5xbf16, #tpu.memory_space<vmem>>, vector<128x5xbf16>
    %cst_59 = arith.constant dense<0.000000e+00> : vector<8x5xf32>
    %108 = tpu.matmul %106, %107, %cst_59 {dimension_numbers = #tpu.dot_dimension_numbers<[1], [0], [0], [1], [0, 0, 1, 1], [], []>} : vector<8x128xbf16>, vector<128x5xbf16>, vector<8x5xf32> -> vector<8x5xf32>
    %c0_60 = arith.constant 0 : index
    %c0_61 = arith.constant 0 : index
    %109 = vector.load %arg10[%c0_60, %c0_61] : memref<1x5xf32, #tpu.memory_space<vmem>>, vector<1x5xf32>
    %110 = vector.broadcast %109 : vector<1x5xf32> to vector<8x5xf32>
    %111 = arith.addf %108, %110 : vector<8x5xf32>
    %cst_62 = arith.constant dense<0xFF800000> : vector<8xf32>
    %112 = vector.multi_reduction <maximumf>, %111, %cst_62 [1] : vector<8x5xf32> to vector<8xf32>
    %113 = vector.shape_cast %112 : vector<8xf32> to vector<8x1xf32>
    %114 = vector.broadcast %113 : vector<8x1xf32> to vector<8x5xf32>
    %115 = arith.subf %111, %114 : vector<8x5xf32>
    %116 = math.exp %115 : vector<8x5xf32>
    %cst_63 = arith.constant dense<0.000000e+00> : vector<8xf32>
    %117 = vector.multi_reduction <add>, %116, %cst_63 [1] : vector<8x5xf32> to vector<8xf32>
    %118 = vector.shape_cast %117 : vector<8xf32> to vector<8x1xf32>
    %119 = math.log %118 : vector<8x1xf32>
    %120 = vector.broadcast %119 : vector<8x1xf32> to vector<8x5xf32>
    %121 = arith.subf %115, %120 : vector<8x5xf32>
    %c0_64 = arith.constant 0 : index
    %c0_65 = arith.constant 0 : index
    %122 = vector.load %arg11[%c0_64, %c0_65] : memref<8x5xf32, #tpu.memory_space<vmem>>, vector<8x5xf32>
    %123 = arith.mulf %121, %122 : vector<8x5xf32>
    %124 = vector.shape_cast %123 : vector<8x5xf32> to vector<1x8x5xf32>
    %cst_66 = arith.constant dense<0.000000e+00> : vector<1xf32>
    %125 = vector.multi_reduction <add>, %124, %cst_66 [1, 2] : vector<1x8x5xf32> to vector<1xf32>
    %126 = vector.shape_cast %125 : vector<1xf32> to vector<1x1x1xf32>
    %127 = vector.extract %126[0, 0, 0] : f32 from vector<1x1x1xf32>
    %cst_67 = arith.constant 0.000000e+00 : f32
    %128 = arith.subf %cst_67, %127 : f32
    %cst_68 = arith.constant 4.000000e+00 : f32
    %129 = arith.divf %128, %cst_68 : f32
    %c0_69 = arith.constant 0 : index
    %c0_70 = arith.constant 0 : index
    %130 = memref.load %arg12[%c0_69, %c0_70] : memref<1x1xf32, #tpu.memory_space<smem>>
    memref.store %129, %arg12[%c0_69, %c0_70] : memref<1x1xf32, #tpu.memory_space<smem>>
    %131 = arith.truncf %105 : vector<8x128xf32> to vector<8x128xbf16>
    %cst_71 = arith.constant dense<0.000000e+00> : vector<8x8xf32>
    %132 = tpu.matmul %131, %131, %cst_71 {dimension_numbers = #tpu.dot_dimension_numbers<[1], [1], [0], [0], [0, 0, 1, 0], [], []>} : vector<8x128xbf16>, vector<8x128xbf16>, vector<8x8xf32> -> vector<8x8xf32>
    %133 = arith.mulf %105, %105 : vector<8x128xf32>
    %cst_72 = arith.constant dense<0.000000e+00> : vector<8xf32>
    %134 = vector.multi_reduction <add>, %133, %cst_72 [1] : vector<8x128xf32> to vector<8xf32>
    %135 = vector.shape_cast %134 : vector<8xf32> to vector<8x1xf32>
    %cst_73 = arith.constant 1.000000e+00 : f32
    %136 = vector.broadcast %cst_73 : f32 to vector<8x128xf32>
    %cst_74 = arith.constant dense<0.000000e+00> : vector<8x8xf32>
    %137 = tpu.matmul %136, %133, %cst_74 {dimension_numbers = #tpu.dot_dimension_numbers<[1], [1], [0], [0], [0, 0, 1, 0], [], []>} : vector<8x128xf32>, vector<8x128xf32>, vector<8x8xf32> -> vector<8x8xf32>
    %138 = vector.extract_strided_slice %137 {offsets = [0, 0], sizes = [1, 8], strides = [1, 1]} : vector<8x8xf32> to vector<1x8xf32>
    %139 = tpu.iota {dimensions = array<i32: 0>} : vector<8x8xi32>
    %140 = tpu.iota {dimensions = array<i32: 1>} : vector<8x8xi32>
    %141 = vector.broadcast %135 : vector<8x1xf32> to vector<8x8xf32>
    %142 = vector.broadcast %138 : vector<1x8xf32> to vector<8x8xf32>
    %143 = arith.addf %141, %142 : vector<8x8xf32>
    %cst_75 = arith.constant 2.000000e+00 : f32
    %144 = vector.broadcast %cst_75 : f32 to vector<8x8xf32>
    %145 = arith.mulf %144, %132 : vector<8x8xf32>
    %146 = arith.subf %143, %145 : vector<8x8xf32>
    %cst_76 = arith.constant 0.000000e+00 : f32
    %147 = vector.broadcast %cst_76 : f32 to vector<8x8xf32>
    %148 = arith.maximumf %146, %147 : vector<8x8xf32>
    %149 = arith.cmpi eq, %139, %140 : vector<8x8xi32>
    %cst_77 = arith.constant 0.000000e+00 : f32
    %150 = vector.broadcast %cst_77 : f32 to vector<8x8xf32>
    %151 = arith.select %149, %150, %148 : vector<8x8xi1>, vector<8x8xf32>
    %152 = vector.shape_cast %151 : vector<8x8xf32> to vector<1x8x8xf32>
    %cst_78 = arith.constant dense<0.000000e+00> : vector<1xf32>
    %153 = vector.multi_reduction <add>, %152, %cst_78 [1, 2] : vector<1x8x8xf32> to vector<1xf32>
    %154 = vector.shape_cast %153 : vector<1xf32> to vector<1x1x1xf32>
    %155 = vector.extract %154[0, 0, 0] : f32 from vector<1x1x1xf32>
    %cst_79 = arith.constant 5.600000e+01 : f32
    %156 = arith.divf %155, %cst_79 : f32
    %cst_80 = arith.constant 4.000000e+00 : f32
    %157 = arith.divf %156, %cst_80 : f32
    %cst_81 = arith.constant 1.000000e+00 : f32
    %158 = arith.divf %cst_81, %157 : f32
    %cst_82 = arith.constant 0.000000e+00 : f32
    %159 = vector.broadcast %cst_82 : f32 to vector<8x8xf32>
    %cst_83 = arith.constant 0.000000e+00 : f32
    %160 = arith.subf %cst_83, %158 : f32
    %cst_84 = arith.constant 1.000000e+00 : f32
    %161 = arith.mulf %160, %cst_84 : f32
    %162 = vector.broadcast %161 : f32 to vector<8x8xf32>
    %163 = arith.mulf %151, %162 : vector<8x8xf32>
    %164 = math.exp %163 : vector<8x8xf32>
    %165 = arith.addf %159, %164 : vector<8x8xf32>
    %cst_85 = arith.constant 0.000000e+00 : f32
    %166 = arith.subf %cst_85, %158 : f32
    %cst_86 = arith.constant 5.000000e-01 : f32
    %167 = arith.mulf %166, %cst_86 : f32
    %168 = vector.broadcast %167 : f32 to vector<8x8xf32>
    %169 = arith.mulf %151, %168 : vector<8x8xf32>
    %170 = math.exp %169 : vector<8x8xf32>
    %171 = arith.addf %165, %170 : vector<8x8xf32>
    %cst_87 = arith.constant 0.000000e+00 : f32
    %172 = arith.subf %cst_87, %158 : f32
    %cst_88 = arith.constant 2.500000e-01 : f32
    %173 = arith.mulf %172, %cst_88 : f32
    %174 = vector.broadcast %173 : f32 to vector<8x8xf32>
    %175 = arith.mulf %151, %174 : vector<8x8xf32>
    %176 = math.exp %175 : vector<8x8xf32>
    %177 = arith.addf %171, %176 : vector<8x8xf32>
    %cst_89 = arith.constant 0.000000e+00 : f32
    %178 = arith.subf %cst_89, %158 : f32
    %cst_90 = arith.constant 1.250000e-01 : f32
    %179 = arith.mulf %178, %cst_90 : f32
    %180 = vector.broadcast %179 : f32 to vector<8x8xf32>
    %181 = arith.mulf %151, %180 : vector<8x8xf32>
    %182 = math.exp %181 : vector<8x8xf32>
    %183 = arith.addf %177, %182 : vector<8x8xf32>
    %cst_91 = arith.constant 0.000000e+00 : f32
    %184 = arith.subf %cst_91, %158 : f32
    %cst_92 = arith.constant 6.250000e-02 : f32
    %185 = arith.mulf %184, %cst_92 : f32
    %186 = vector.broadcast %185 : f32 to vector<8x8xf32>
    %187 = arith.mulf %151, %186 : vector<8x8xf32>
    %188 = math.exp %187 : vector<8x8xf32>
    %189 = arith.addf %183, %188 : vector<8x8xf32>
    %c4_i32 = arith.constant 4 : i32
    %190 = vector.broadcast %c4_i32 : i32 to vector<8x8xi32>
    %191 = arith.cmpi slt, %139, %190 : vector<8x8xi32>
    %c4_i32_93 = arith.constant 4 : i32
    %192 = vector.broadcast %c4_i32_93 : i32 to vector<8x8xi32>
    %193 = arith.cmpi slt, %140, %192 : vector<8x8xi32>
    %194 = arith.xori %191, %193 : vector<8x8xi1>
    %cst_94 = arith.constant dense<true> : vector<8x8xi1>
    %195 = arith.xori %194, %cst_94 : vector<8x8xi1>
    %cst_95 = arith.constant 1.000000e+00 : f32
    %cst_96 = arith.constant -1.000000e+00 : f32
    %196 = vector.broadcast %cst_95 : f32 to vector<8x8xf32>
    %197 = vector.broadcast %cst_96 : f32 to vector<8x8xf32>
    %198 = arith.select %195, %196, %197 : vector<8x8xi1>, vector<8x8xf32>
    %199 = arith.mulf %189, %198 : vector<8x8xf32>
    %200 = vector.shape_cast %199 : vector<8x8xf32> to vector<1x8x8xf32>
    %cst_97 = arith.constant dense<0.000000e+00> : vector<1xf32>
    %201 = vector.multi_reduction <add>, %200, %cst_97 [1, 2] : vector<1x8x8xf32> to vector<1xf32>
    %202 = vector.shape_cast %201 : vector<1xf32> to vector<1x1x1xf32>
    %203 = vector.extract %202[0, 0, 0] : f32 from vector<1x1x1xf32>
    %cst_98 = arith.constant 1.600000e+01 : f32
    %204 = arith.divf %203, %cst_98 : f32
    %c0_99 = arith.constant 0 : index
    %c0_100 = arith.constant 0 : index
    %205 = memref.load %arg13[%c0_99, %c0_100] : memref<1x1xf32, #tpu.memory_space<smem>>
    memref.store %204, %arg13[%c0_99, %c0_100] : memref<1x1xf32, #tpu.memory_space<smem>>
    return
  }
}

</mosaic_0001>

<llo_original>
// kernel: maml_forward_mark0.1
$region0: #{maml_forward_mark0.1}
  #allocation0 [shape = 'u32[]', space=smem, size = 0x4, offset = 0x4, fixed_abs, tag = 'smem constant byte address 0x4 - core index']
  #allocation1 [shape = 'u32[144,128]{1,0:T(1,128)}', space=vmem, size = 0x12000, scoped, tag = 'internal scratch']
  %s0 = inlined_call_operand.vmem [shape: f32[18,8,128], index: 0, kind: input, shape index: {}]
  %s1 = inlined_call_operand.vmem [shape: bf16[3,128,128], index: 1, kind: input, shape index: {}]
  %s2 = inlined_call_operand.vmem [shape: f32[1,128], index: 2, kind: input, shape index: {}]
  %s3 = inlined_call_operand.vmem [shape: f32[1,128], index: 3, kind: input, shape index: {}]
  %s4 = inlined_call_operand.vmem [shape: bf16[3,120,64], index: 4, kind: input, shape index: {}]
  %s5 = inlined_call_operand.vmem [shape: f32[1,64], index: 5, kind: input, shape index: {}]
  %s6 = inlined_call_operand.vmem [shape: f32[1,64], index: 6, kind: input, shape index: {}]
  %s7 = inlined_call_operand.vmem [shape: bf16[4,56,128], index: 7, kind: input, shape index: {}]
  %s8 = inlined_call_operand.vmem [shape: f32[1,128], index: 8, kind: input, shape index: {}]
  %s9 = inlined_call_operand.vmem [shape: bf16[128,5], index: 9, kind: input, shape index: {}]
  %s10 = inlined_call_operand.vmem [shape: f32[1,5], index: 10, kind: input, shape index: {}]
  %s11 = inlined_call_operand.vmem [shape: f32[8,5], index: 11, kind: input, shape index: {}]
  %s12 = inlined_call_operand.hbm [shape: f32[1,1], index: 12, kind: output, shape index: {0}]
  %s13 = inlined_call_operand.hbm [shape: f32[1,1], index: 13, kind: output, shape index: {1}]
  %14 = xla_tuple %s12, %s13
  %s15 = sld [smem:[#allocation0]]
  $region66: #{maml_forward_mark0.1} parent=0
    _
  %s17 = ssub.s32 1, %s15
  %s18 = scalar_select 0, %s17, %s15
  $region1: #{maml_forward_mark0.1} parent=0
    #allocation2 [shape = 'u8[512]{0}', space=smem, size = 0x200, scoped, tag = 'output window, operand 0, single buffered']
    #allocation3 [shape = 's32[1]{0}', space=sflag, size = 0x4, scoped, tag = 'scoped memory for maml_forward_mark0.1']
    #allocation4 [shape = 'u8[512]{0}', space=smem, size = 0x200, scoped, tag = 'output window, operand 1, single buffered']
    #allocation5 [shape = 's32[1]{0}', space=sflag, size = 0x4, scoped, tag = 'scoped memory for maml_forward_mark0.1']
    %19 = vsyncpa [#allocation3], 0
    %20 = vsyncpa [#allocation5], 0
    // Predicated region
    $region2: #{maml_forward_mark0.1} parent=1 // pred_check
      _
    $region3: #{maml_forward_mark0.1} parent=1 // pred_check_branch
      %22 = sbr.rel (0) target = $region5
    $region4: #{maml_forward_mark0.1} parent=1 // pred_region
      _
    $region5: #{maml_forward_mark0.1} parent=1 // pred_fallthru
      _
    // Predicated region
    $region6: #{maml_forward_mark0.1} parent=1 // pred_check
      _
    $region7: #{maml_forward_mark0.1} parent=1 // pred_check_branch
      %24 = sbr.rel (0) target = $region9
    $region8: #{maml_forward_mark0.1} parent=1 // pred_region
      _
    $region9: #{maml_forward_mark0.1} parent=1 // pred_fallthru
      _
    // Predicated region
    $region10: #{maml_forward_mark0.1} parent=1 // pred_check
      _
    $region11: #{maml_forward_mark0.1} parent=1 // pred_check_branch
      %26 = sbr.rel (0) target = $region13
    $region12: #{maml_forward_mark0.1} parent=1 // pred_region
      _
    $region13: #{maml_forward_mark0.1} parent=1 // pred_fallthru
      _
    // Predicated region
    $region14: #{maml_forward_mark0.1} parent=1 // pred_check
      _
    $region15: #{maml_forward_mark0.1} parent=1 // pred_check_branch
      %28 = sbr.rel (0) target = $region17
    $region16: #{maml_forward_mark0.1} parent=1 // pred_region
      _
    $region17: #{maml_forward_mark0.1} parent=1 // pred_fallthru
      _
    // Predicated region
    $region18: #{maml_forward_mark0.1} parent=1 // pred_check
      _
    $region19: #{maml_forward_mark0.1} parent=1 // pred_check_branch
      %30 = sbr.rel (0) target = $region21
    $region20: #{maml_forward_mark0.1} parent=1 // pred_region
      _
    $region21: #{maml_forward_mark0.1} parent=1 // pred_fallthru
      _
    // Predicated region
    $region22: #{maml_forward_mark0.1} parent=1 // pred_check
      _
    $region23: #{maml_forward_mark0.1} parent=1 // pred_check_branch
      %32 = sbr.rel (0) target = $region25
    $region24: #{maml_forward_mark0.1} parent=1 // pred_region
      _
    $region25: #{maml_forward_mark0.1} parent=1 // pred_fallthru
      _
    // Predicated region
    $region26: #{maml_forward_mark0.1} parent=1 // pred_check
      _
    $region27: #{maml_forward_mark0.1} parent=1 // pred_check_branch
      %34 = sbr.rel (0) target = $region29
    $region28: #{maml_forward_mark0.1} parent=1 // pred_region
      _
    $region29: #{maml_forward_mark0.1} parent=1 // pred_fallthru
      _
    // Predicated region
    $region30: #{maml_forward_mark0.1} parent=1 // pred_check
      _
    $region31: #{maml_forward_mark0.1} parent=1 // pred_check_branch
      %36 = sbr.rel (0) target = $region33
    $region32: #{maml_forward_mark0.1} parent=1 // pred_region
      _
    $region33: #{maml_forward_mark0.1} parent=1 // pred_fallthru
      _
    // Predicated region
    $region34: #{maml_forward_mark0.1} parent=1 // pred_check
      _
    $region35: #{maml_forward_mark0.1} parent=1 // pred_check_branch
      %38 = sbr.rel (0) target = $region37
    $region36: #{maml_forward_mark0.1} parent=1 // pred_region
      _
    $region37: #{maml_forward_mark0.1} parent=1 // pred_fallthru
      _
    // Predicated region
    $region38: #{maml_forward_mark0.1} parent=1 // pred_check
      _
    $region39: #{maml_forward_mark0.1} parent=1 // pred_check_branch
      %40 = sbr.rel (0) target = $region41
    $region40: #{maml_forward_mark0.1} parent=1 // pred_region
      _
    $region41: #{maml_forward_mark0.1} parent=1 // pred_fallthru
      _
    // Predicated region
    $region42: #{maml_forward_mark0.1} parent=1 // pred_check
      _
    $region43: #{maml_forward_mark0.1} parent=1 // pred_check_branch
      %42 = sbr.rel (0) target = $region45
    $region44: #{maml_forward_mark0.1} parent=1 // pred_region
      _
    $region45: #{maml_forward_mark0.1} parent=1 // pred_fallthru
      _
    // Predicated region
    $region46: #{maml_forward_mark0.1} parent=1 // pred_check
      _
    $region47: #{maml_forward_mark0.1} parent=1 // pred_check_branch
      %44 = sbr.rel (0) target = $region49
    $region48: #{maml_forward_mark0.1} parent=1 // pred_region
      _
    $region49: #{maml_forward_mark0.1} parent=1 // pred_fallthru
      _
    %v46 = vld [vmem:[%s0] sm:$0xff]
    %v47 = vld [vmem:[%s0 + $0x8] sm:$0xff]
    %v48 = vld [vmem:[%s0 + $0x10] sm:$0xff]
    %v49 = vld [vmem:[%s0 + $0x18] sm:$0xff]
    %v50 = vld [vmem:[%s0 + $0x20] sm:$0xff]
    %v51 = vld [vmem:[%s0 + $0x28] sm:$0xff]
    %v52 = vld [vmem:[%s0 + $0x30] sm:$0xff]
    %v53 = vld [vmem:[%s0 + $0x38] sm:$0xff]
    %v54 = vld [vmem:[%s0 + $0x40] sm:$0xff]
    %v55 = vld [vmem:[%s0 + $0x48] sm:$0xff]
    %v56 = vld [vmem:[%s0 + $0x50] sm:$0xff]
    %v57 = vld [vmem:[%s0 + $0x58] sm:$0xff]
    %v58 = vld [vmem:[%s0 + $0x60] sm:$0xff]
    %v59 = vld [vmem:[%s0 + $0x68] sm:$0xff]
    %v60 = vld [vmem:[%s0 + $0x70] sm:$0xff]
    %v61 = vld [vmem:[%s0 + $0x78] sm:$0xff]
    %v62 = vpack.c.bf16 %v47, %v46
    %v63 = vpack.c.bf16 %v49, %v48
    %v64 = vpack.c.bf16 %v51, %v50
    %v65 = vpack.c.bf16 %v53, %v52
    %v66 = vpack.c.bf16 %v55, %v54
    %v67 = vpack.c.bf16 %v57, %v56
    %v68 = vpack.c.bf16 %v59, %v58
    %v69 = vpack.c.bf16 %v61, %v60
    %v70 = vld [vmem:[%s1] sm:$0xf]
    %v71 = vld [vmem:[%s1 + $0x4] sm:$0xf]
    %v72 = vld [vmem:[%s1 + $0x8] sm:$0xf]
    %v73 = vld [vmem:[%s1 + $0xc] sm:$0xf]
    %v74 = vld [vmem:[%s1 + $0x10] sm:$0xf]
    %v75 = vld [vmem:[%s1 + $0x14] sm:$0xf]
    %v76 = vld [vmem:[%s1 + $0x18] sm:$0xf]
    %v77 = vld [vmem:[%s1 + $0x1c] sm:$0xf]
    %v78 = vld [vmem:[%s1 + $0x20] sm:$0xf]
    %v79 = vld [vmem:[%s1 + $0x24] sm:$0xf]
    %v80 = vld [vmem:[%s1 + $0x28] sm:$0xf]
    %v81 = vld [vmem:[%s1 + $0x2c] sm:$0xf]
    %v82 = vld [vmem:[%s1 + $0x30] sm:$0xf]
    %v83 = vld [vmem:[%s1 + $0x34] sm:$0xf]
    %v84 = vld [vmem:[%s1 + $0x38] sm:$0xf]
    %v85 = vld [vmem:[%s1 + $0x3c] sm:$0xf]
    %s86 = scalar_lea.vmem %s0, 8
    %v87 = vld [vmem:[%s86] sm:$0xff]
    %v88 = vld [vmem:[%s86 + $0x8] sm:$0xff]
    %v89 = vld [vmem:[%s86 + $0x10] sm:$0xff]
    %v90 = vld [vmem:[%s86 + $0x18] sm:$0xff]
    %v91 = vld [vmem:[%s86 + $0x20] sm:$0xff]
    %v92 = vld [vmem:[%s86 + $0x28] sm:$0xff]
    %v93 = vld [vmem:[%s86 + $0x30] sm:$0xff]
    %v94 = vld [vmem:[%s86 + $0x38] sm:$0xff]
    %v95 = vld [vmem:[%s86 + $0x40] sm:$0xff]
    %v96 = vld [vmem:[%s86 + $0x48] sm:$0xff]
    %v97 = vld [vmem:[%s86 + $0x50] sm:$0xff]
    %v98 = vld [vmem:[%s86 + $0x58] sm:$0xff]
    %v99 = vld [vmem:[%s86 + $0x60] sm:$0xff]
    %v100 = vld [vmem:[%s86 + $0x68] sm:$0xff]
    %v101 = vld [vmem:[%s86 + $0x70] sm:$0xff]
    %v102 = vld [vmem:[%s86 + $0x78] sm:$0xff]
    %v103 = vpack.c.bf16 %v88, %v87
    %v104 = vpack.c.bf16 %v90, %v89
    %v105 = vpack.c.bf16 %v92, %v91
    %v106 = vpack.c.bf16 %v94, %v93
    %v107 = vpack.c.bf16 %v96, %v95
    %v108 = vpack.c.bf16 %v98, %v97
    %v109 = vpack.c.bf16 %v100, %v99
    %v110 = vpack.c.bf16 %v102, %v101
    %s111 = scalar_lea.vmem %s1, 64
    %v112 = vld [vmem:[%s111] sm:$0xf]
    %v113 = vld [vmem:[%s111 + $0x4] sm:$0xf]
    %v114 = vld [vmem:[%s111 + $0x8] sm:$0xf]
    %v115 = vld [vmem:[%s111 + $0xc] sm:$0xf]
    %v116 = vld [vmem:[%s111 + $0x10] sm:$0xf]
    %v117 = vld [vmem:[%s111 + $0x14] sm:$0xf]
    %v118 = vld [vmem:[%s111 + $0x18] sm:$0xf]
    %v119 = vld [vmem:[%s111 + $0x1c] sm:$0xf]
    %v120 = vld [vmem:[%s111 + $0x20] sm:$0xf]
    %v121 = vld [vmem:[%s111 + $0x24] sm:$0xf]
    %v122 = vld [vmem:[%s111 + $0x28] sm:$0xf]
    %v123 = vld [vmem:[%s111 + $0x2c] sm:$0xf]
    %v124 = vld [vmem:[%s111 + $0x30] sm:$0xf]
    %v125 = vld [vmem:[%s111 + $0x34] sm:$0xf]
    %v126 = vld [vmem:[%s111 + $0x38] sm:$0xf]
    %v127 = vld [vmem:[%s111 + $0x3c] sm:$0xf]
    %v144 = vunpack.c.l.b16 %v112
    %v145 = vunpack.c.l.b16 %v113
    %v146 = vunpack.c.l.b16 %v114
    %v147 = vunpack.c.l.b16 %v115
    %v148 = vunpack.c.l.b16 %v116
    %v149 = vunpack.c.l.b16 %v117
    %v150 = vunpack.c.l.b16 %v118
    %v151 = vunpack.c.l.b16 %v119
    %v152 = vunpack.c.l.b16 %v120
    %v153 = vunpack.c.l.b16 %v121
    %v154 = vunpack.c.l.b16 %v122
    %v155 = vunpack.c.l.b16 %v123
    %v156 = vunpack.c.l.b16 %v124
    %v157 = vunpack.c.l.b16 %v125
    %v158 = vunpack.c.l.b16 %v126
    %v159 = vunpack.c.l.b16 %v127
    %v160 = vpack.c.b16 %v145, %v144
    %v161 = vpack.c.b16 %v147, %v146
    %v162 = vpack.c.b16 %v149, %v148
    %v163 = vpack.c.b16 %v151, %v150
    %v164 = vpack.c.b16 %v153, %v152
    %v165 = vpack.c.b16 %v155, %v154
    %v166 = vpack.c.b16 %v157, %v156
    %v167 = vpack.c.b16 %v159, %v158
    %176 = vmatprep.subr.bf16.mxu0 0
    %177 = vmatpush1.bf16.msra.mxu0 %v167
    %178 = vmatprep.subr.bf16.mxu0 0
    %179 = vmatpush1.bf16.msra.mxu0 %v166
    %180 = vmatprep.subr.bf16.mxu0 0
    %181 = vmatpush1.bf16.msra.mxu0 %v165
    %182 = vmatprep.subr.bf16.mxu0 0
    %183 = vmatpush1.bf16.msra.mxu0 %v164
    %184 = vmatprep.subr.bf16.mxu0 0
    %185 = vmatpush1.bf16.msra.mxu0 %v163
    %186 = vmatprep.subr.bf16.mxu0 0
    %187 = vmatpush1.bf16.msra.mxu0 %v162
    %188 = vmatprep.subr.bf16.mxu0 0
    %189 = vmatpush1.bf16.msra.mxu0 %v161
    %190 = vmatprep.subr.bf16.mxu0 0
    %191 = vmatpush1.bf16.msra.mxu0 %v160
    %192 = vmatprep.subr.bf16.mxu0 0
    %193 = vmatpush2.bf16.msra.mxu0 0
    %194 = vmatprep.subr.bf16.mxu0 0
    %195 = vmatpush2.bf16.msra.mxu0 0
    %196 = vmatprep.subr.bf16.mxu0 0
    %197 = vmatpush2.bf16.msra.mxu0 0
    %198 = vmatprep.subr.bf16.mxu0 0
    %199 = vmatpush2.bf16.msra.mxu0 0
    %200 = vmatprep.subr.bf16.mxu0 0
    %201 = vmatpush2.bf16.msra.mxu0 0
    %202 = vmatprep.subr.bf16.mxu0 0
    %203 = vmatpush2.bf16.msra.mxu0 0
    %204 = vmatprep.subr.bf16.mxu0 0
    %205 = vmatpush2.bf16.msra.mxu0 0
    %206 = vmatprep.subr.bf16.mxu0 0
    %207 = vmatpush2.bf16.msra.mxu0 0
    %208 = vmatprep.mubr.bf16.mxu0 0
    %209 = vmatmul.mubr.bf16.gmra.mxu0 %v103
    %v210 = vpop.f32.mrf.mxu0
    %v211 = vadd.f32 0.0, %v210
    %v212 = vpop.f32.mrf.mxu0
    %v213 = vpop.f32.mrf.mxu0
    %v214 = vadd.f32 0.0, %v213
    %v215 = vpop.f32.mrf.mxu0
    %216 = vmatprep.mubr.bf16.mxu0 0
    %217 = vmatmul.mubr.bf16.gmra.mxu0 %v104
    %v218 = vpop.f32.mrf.mxu0
    %v219 = vadd.f32 0.0, %v218
    %v220 = vpop.f32.mrf.mxu0
    %v221 = vpop.f32.mrf.mxu0
    %v222 = vadd.f32 0.0, %v221
    %v223 = vpop.f32.mrf.mxu0
    %224 = vmatprep.mubr.bf16.mxu0 0
    %225 = vmatmul.mubr.bf16.gmra.mxu0 %v105
    %v226 = vpop.f32.mrf.mxu0
    %v227 = vadd.f32 0.0, %v226
    %v228 = vpop.f32.mrf.mxu0
    %v229 = vpop.f32.mrf.mxu0
    %v230 = vadd.f32 0.0, %v229
    %v231 = vpop.f32.mrf.mxu0
    %232 = vmatprep.mubr.bf16.mxu0 0
    %233 = vmatmul.mubr.bf16.gmra.mxu0 %v106
    %v234 = vpop.f32.mrf.mxu0
    %v235 = vadd.f32 0.0, %v234
    %v236 = vpop.f32.mrf.mxu0
    %v237 = vpop.f32.mrf.mxu0
    %v238 = vadd.f32 0.0, %v237
    %v239 = vpop.f32.mrf.mxu0
    %240 = vmatprep.mubr.bf16.mxu0 0
    %241 = vmatmul.mubr.bf16.gmra.mxu0 %v107
    %v242 = vpop.f32.mrf.mxu0
    %v243 = vadd.f32 0.0, %v242
    %v244 = vpop.f32.mrf.mxu0
    %v245 = vpop.f32.mrf.mxu0
    %v246 = vadd.f32 0.0, %v245
    %v247 = vpop.f32.mrf.mxu0
    %248 = vmatprep.mubr.bf16.mxu0 0
    %249 = vmatmul.mubr.bf16.gmra.mxu0 %v108
    %v250 = vpop.f32.mrf.mxu0
    %v251 = vadd.f32 0.0, %v250
    %v252 = vpop.f32.mrf.mxu0
    %v253 = vpop.f32.mrf.mxu0
    %v254 = vadd.f32 0.0, %v253
    %v255 = vpop.f32.mrf.mxu0
    %256 = vmatprep.mubr.bf16.mxu0 0
    %257 = vmatmul.mubr.bf16.gmra.mxu0 %v109
    %v258 = vpop.f32.mrf.mxu0
    %v259 = vadd.f32 0.0, %v258
    %v260 = vpop.f32.mrf.mxu0
    %v261 = vpop.f32.mrf.mxu0
    %v262 = vadd.f32 0.0, %v261
    %v263 = vpop.f32.mrf.mxu0
    %264 = vmatprep.mubr.bf16.mxu0 0
    %265 = vmatmul.mubr.bf16.gmra.mxu0 %v110
    %v266 = vpop.f32.mrf.mxu0
    %v267 = vadd.f32 0.0, %v266
    %v268 = vpop.f32.mrf.mxu0
    %v269 = vpop.f32.mrf.mxu0
    %v270 = vadd.f32 0.0, %v269
    %v271 = vpop.f32.mrf.mxu0
    %272 = vdwg.mxu0
    %v289 = vunpack.c.l.b16 %v70
    %v290 = vunpack.c.l.b16 %v71
    %v291 = vunpack.c.l.b16 %v72
    %v292 = vunpack.c.l.b16 %v73
    %v293 = vunpack.c.l.b16 %v74
    %v294 = vunpack.c.l.b16 %v75
    %v295 = vunpack.c.l.b16 %v76
    %v296 = vunpack.c.l.b16 %v77
    %v297 = vunpack.c.l.b16 %v78
    %v298 = vunpack.c.l.b16 %v79
    %v299 = vunpack.c.l.b16 %v80
    %v300 = vunpack.c.l.b16 %v81
    %v301 = vunpack.c.l.b16 %v82
    %v302 = vunpack.c.l.b16 %v83
    %v303 = vunpack.c.l.b16 %v84
    %v304 = vunpack.c.l.b16 %v85
    %v305 = vpack.c.b16 %v290, %v289
    %v306 = vpack.c.b16 %v292, %v291
    %v307 = vpack.c.b16 %v294, %v293
    %v308 = vpack.c.b16 %v296, %v295
    %v309 = vpack.c.b16 %v298, %v297
    %v310 = vpack.c.b16 %v300, %v299
    %v311 = vpack.c.b16 %v302, %v301
    %v312 = vpack.c.b16 %v304, %v303
    %321 = vmatprep.subr.bf16.mxu0 0
    %322 = vmatpush1.bf16.msra.mxu0 %v312
    %323 = vmatprep.subr.bf16.mxu0 0
    %324 = vmatpush1.bf16.msra.mxu0 %v311
    %325 = vmatprep.subr.bf16.mxu0 0
    %326 = vmatpush1.bf16.msra.mxu0 %v310
    %327 = vmatprep.subr.bf16.mxu0 0
    %328 = vmatpush1.bf16.msra.mxu0 %v309
    %329 = vmatprep.subr.bf16.mxu0 0
    %330 = vmatpush1.bf16.msra.mxu0 %v308
    %331 = vmatprep.subr.bf16.mxu0 0
    %332 = vmatpush1.bf16.msra.mxu0 %v307
    %333 = vmatprep.subr.bf16.mxu0 0
    %334 = vmatpush1.bf16.msra.mxu0 %v306
    %335 = vmatprep.subr.bf16.mxu0 0
    %336 = vmatpush1.bf16.msra.mxu0 %v305
    %337 = vmatprep.subr.bf16.mxu0 0
    %338 = vmatpush2.bf16.msra.mxu0 0
    %339 = vmatprep.subr.bf16.mxu0 0
    %340 = vmatpush2.bf16.msra.mxu0 0
    %341 = vmatprep.subr.bf16.mxu0 0
    %342 = vmatpush2.bf16.msra.mxu0 0
    %343 = vmatprep.subr.bf16.mxu0 0
    %344 = vmatpush2.bf16.msra.mxu0 0
    %345 = vmatprep.subr.bf16.mxu0 0
    %346 = vmatpush2.bf16.msra.mxu0 0
    %347 = vmatprep.subr.bf16.mxu0 0
    %348 = vmatpush2.bf16.msra.mxu0 0
    %349 = vmatprep.subr.bf16.mxu0 0
    %350 = vmatpush2.bf16.msra.mxu0 0
    %351 = vmatprep.subr.bf16.mxu0 0
    %352 = vmatpush2.bf16.msra.mxu0 0
    %353 = vmatprep.mubr.bf16.mxu0 0
    %354 = vmatmul.mubr.bf16.gmra.mxu0 %v62
    %v355 = vpop.f32.mrf.mxu0
    %v356 = vadd.f32 %v211, %v355
    %v357 = vpop.f32.mrf.mxu0
    %v358 = vpop.f32.mrf.mxu0
    %v359 = vadd.f32 %v214, %v358
    %v360 = vpop.f32.mrf.mxu0
    %361 = vmatprep.mubr.bf16.mxu0 0
    %362 = vmatmul.mubr.bf16.gmra.mxu0 %v63
    %v363 = vpop.f32.mrf.mxu0
    %v364 = vadd.f32 %v219, %v363
    %v365 = vpop.f32.mrf.mxu0
    %v366 = vpop.f32.mrf.mxu0
    %v367 = vadd.f32 %v222, %v366
    %v368 = vpop.f32.mrf.mxu0
    %369 = vmatprep.mubr.bf16.mxu0 0
    %370 = vmatmul.mubr.bf16.gmra.mxu0 %v64
    %v371 = vpop.f32.mrf.mxu0
    %v372 = vadd.f32 %v227, %v371
    %v373 = vpop.f32.mrf.mxu0
    %v374 = vpop.f32.mrf.mxu0
    %v375 = vadd.f32 %v230, %v374
    %v376 = vpop.f32.mrf.mxu0
    %377 = vmatprep.mubr.bf16.mxu0 0
    %378 = vmatmul.mubr.bf16.gmra.mxu0 %v65
    %v379 = vpop.f32.mrf.mxu0
    %v380 = vadd.f32 %v235, %v379
    %v381 = vpop.f32.mrf.mxu0
    %v382 = vpop.f32.mrf.mxu0
    %v383 = vadd.f32 %v238, %v382
    %v384 = vpop.f32.mrf.mxu0
    %385 = vmatprep.mubr.bf16.mxu0 0
    %386 = vmatmul.mubr.bf16.gmra.mxu0 %v66
    %v387 = vpop.f32.mrf.mxu0
    %v388 = vadd.f32 %v243, %v387
    %v389 = vpop.f32.mrf.mxu0
    %v390 = vpop.f32.mrf.mxu0
    %v391 = vadd.f32 %v246, %v390
    %v392 = vpop.f32.mrf.mxu0
    %393 = vmatprep.mubr.bf16.mxu0 0
    %394 = vmatmul.mubr.bf16.gmra.mxu0 %v67
    %v395 = vpop.f32.mrf.mxu0
    %v396 = vadd.f32 %v251, %v395
    %v397 = vpop.f32.mrf.mxu0
    %v398 = vpop.f32.mrf.mxu0
    %v399 = vadd.f32 %v254, %v398
    %v400 = vpop.f32.mrf.mxu0
    %401 = vmatprep.mubr.bf16.mxu0 0
    %402 = vmatmul.mubr.bf16.gmra.mxu0 %v68
    %v403 = vpop.f32.mrf.mxu0
    %v404 = vadd.f32 %v259, %v403
    %v405 = vpop.f32.mrf.mxu0
    %v406 = vpop.f32.mrf.mxu0
    %v407 = vadd.f32 %v262, %v406
    %v408 = vpop.f32.mrf.mxu0
    %409 = vmatprep.mubr.bf16.mxu0 0
    %410 = vmatmul.mubr.bf16.gmra.mxu0 %v69
    %v411 = vpop.f32.mrf.mxu0
    %v412 = vadd.f32 %v267, %v411
    %v413 = vpop.f32.mrf.mxu0
    %v414 = vpop.f32.mrf.mxu0
    %v415 = vadd.f32 %v270, %v414
    %v416 = vpop.f32.mrf.mxu0
    %417 = vdwg.mxu0
    %s418 = scalar_lea.vmem %s0, 16
    %v419 = vld [vmem:[%s418] sm:$0xff]
    %v420 = vld [vmem:[%s418 + $0x8] sm:$0xff]
    %v421 = vld [vmem:[%s418 + $0x10] sm:$0xff]
    %v422 = vld [vmem:[%s418 + $0x18] sm:$0xff]
    %v423 = vld [vmem:[%s418 + $0x20] sm:$0xff]
    %v424 = vld [vmem:[%s418 + $0x28] sm:$0xff]
    %v425 = vld [vmem:[%s418 + $0x30] sm:$0xff]
    %v426 = vld [vmem:[%s418 + $0x38] sm:$0xff]
    %v427 = vld [vmem:[%s418 + $0x40] sm:$0xff]
    %v428 = vld [vmem:[%s418 + $0x48] sm:$0xff]
    %v429 = vld [vmem:[%s418 + $0x50] sm:$0xff]
    %v430 = vld [vmem:[%s418 + $0x58] sm:$0xff]
    %v431 = vld [vmem:[%s418 + $0x60] sm:$0xff]
    %v432 = vld [vmem:[%s418 + $0x68] sm:$0xff]
    %v433 = vld [vmem:[%s418 + $0x70] sm:$0xff]
    %v434 = vld [vmem:[%s418 + $0x78] sm:$0xff]
    %v435 = vpack.c.bf16 %v420, %v419
    %v436 = vpack.c.bf16 %v422, %v421
    %v437 = vpack.c.bf16 %v424, %v423
    %v438 = vpack.c.bf16 %v426, %v425
    %v439 = vpack.c.bf16 %v428, %v427
    %v440 = vpack.c.bf16 %v430, %v429
    %v441 = vpack.c.bf16 %v432, %v431
    %v442 = vpack.c.bf16 %v434, %v433
    %s443 = scalar_lea.vmem %s1, 128
    %v444 = vld [vmem:[%s443] sm:$0xf]
    %v445 = vld [vmem:[%s443 + $0x4] sm:$0xf]
    %v446 = vld [vmem:[%s443 + $0x8] sm:$0xf]
    %v447 = vld [vmem:[%s443 + $0xc] sm:$0xf]
    %v448 = vld [vmem:[%s443 + $0x10] sm:$0xf]
    %v449 = vld [vmem:[%s443 + $0x14] sm:$0xf]
    %v450 = vld [vmem:[%s443 + $0x18] sm:$0xf]
    %v451 = vld [vmem:[%s443 + $0x1c] sm:$0xf]
    %v452 = vld [vmem:[%s443 + $0x20] sm:$0xf]
    %v453 = vld [vmem:[%s443 + $0x24] sm:$0xf]
    %v454 = vld [vmem:[%s443 + $0x28] sm:$0xf]
    %v455 = vld [vmem:[%s443 + $0x2c] sm:$0xf]
    %v456 = vld [vmem:[%s443 + $0x30] sm:$0xf]
    %v457 = vld [vmem:[%s443 + $0x34] sm:$0xf]
    %v458 = vld [vmem:[%s443 + $0x38] sm:$0xf]
    %v459 = vld [vmem:[%s443 + $0x3c] sm:$0xf]
    %v476 = vunpack.c.l.b16 %v444
    %v477 = vunpack.c.l.b16 %v445
    %v478 = vunpack.c.l.b16 %v446
    %v479 = vunpack.c.l.b16 %v447
    %v480 = vunpack.c.l.b16 %v448
    %v481 = vunpack.c.l.b16 %v449
    %v482 = vunpack.c.l.b16 %v450
    %v483 = vunpack.c.l.b16 %v451
    %v484 = vunpack.c.l.b16 %v452
    %v485 = vunpack.c.l.b16 %v453
    %v486 = vunpack.c.l.b16 %v454
    %v487 = vunpack.c.l.b16 %v455
    %v488 = vunpack.c.l.b16 %v456
    %v489 = vunpack.c.l.b16 %v457
    %v490 = vunpack.c.l.b16 %v458
    %v491 = vunpack.c.l.b16 %v459
    %v492 = vpack.c.b16 %v477, %v476
    %v493 = vpack.c.b16 %v479, %v478
    %v494 = vpack.c.b16 %v481, %v480
    %v495 = vpack.c.b16 %v483, %v482
    %v496 = vpack.c.b16 %v485, %v484
    %v497 = vpack.c.b16 %v487, %v486
    %v498 = vpack.c.b16 %v489, %v488
    %v499 = vpack.c.b16 %v491, %v490
    %508 = vmatprep.subr.bf16.mxu0 0
    %509 = vmatpush1.bf16.msra.mxu0 %v499
    %510 = vmatprep.subr.bf16.mxu0 0
    %511 = vmatpush1.bf16.msra.mxu0 %v498
    %512 = vmatprep.subr.bf16.mxu0 0
    %513 = vmatpush1.bf16.msra.mxu0 %v497
    %514 = vmatprep.subr.bf16.mxu0 0
    %515 = vmatpush1.bf16.msra.mxu0 %v496
    %516 = vmatprep.subr.bf16.mxu0 0
    %517 = vmatpush1.bf16.msra.mxu0 %v495
    %518 = vmatprep.subr.bf16.mxu0 0
    %519 = vmatpush1.bf16.msra.mxu0 %v494
    %520 = vmatprep.subr.bf16.mxu0 0
    %521 = vmatpush1.bf16.msra.mxu0 %v493
    %522 = vmatprep.subr.bf16.mxu0 0
    %523 = vmatpush1.bf16.msra.mxu0 %v492
    %524 = vmatprep.subr.bf16.mxu0 0
    %525 = vmatpush2.bf16.msra.mxu0 0
    %526 = vmatprep.subr.bf16.mxu0 0
    %527 = vmatpush2.bf16.msra.mxu0 0
    %528 = vmatprep.subr.bf16.mxu0 0
    %529 = vmatpush2.bf16.msra.mxu0 0
    %530 = vmatprep.subr.bf16.mxu0 0
    %531 = vmatpush2.bf16.msra.mxu0 0
    %532 = vmatprep.subr.bf16.mxu0 0
    %533 = vmatpush2.bf16.msra.mxu0 0
    %534 = vmatprep.subr.bf16.mxu0 0
    %535 = vmatpush2.bf16.msra.mxu0 0
    %536 = vmatprep.subr.bf16.mxu0 0
    %537 = vmatpush2.bf16.msra.mxu0 0
    %538 = vmatprep.subr.bf16.mxu0 0
    %539 = vmatpush2.bf16.msra.mxu0 0
    %540 = vmatprep.mubr.bf16.mxu0 0
    %541 = vmatmul.mubr.bf16.gmra.mxu0 %v435
    %v542 = vpop.f32.mrf.mxu0
    %v543 = vadd.f32 0.0, %v542
    %v544 = vpop.f32.mrf.mxu0
    %v545 = vpop.f32.mrf.mxu0
    %v546 = vadd.f32 0.0, %v545
    %v547 = vpop.f32.mrf.mxu0
    %548 = vmatprep.mubr.bf16.mxu0 0
    %549 = vmatmul.mubr.bf16.gmra.mxu0 %v436
    %v550 = vpop.f32.mrf.mxu0
    %v551 = vadd.f32 0.0, %v550
    %v552 = vpop.f32.mrf.mxu0
    %v553 = vpop.f32.mrf.mxu0
    %v554 = vadd.f32 0.0, %v553
    %v555 = vpop.f32.mrf.mxu0
    %556 = vmatprep.mubr.bf16.mxu0 0
    %557 = vmatmul.mubr.bf16.gmra.mxu0 %v437
    %v558 = vpop.f32.mrf.mxu0
    %v559 = vadd.f32 0.0, %v558
    %v560 = vpop.f32.mrf.mxu0
    %v561 = vpop.f32.mrf.mxu0
    %v562 = vadd.f32 0.0, %v561
    %v563 = vpop.f32.mrf.mxu0
    %564 = vmatprep.mubr.bf16.mxu0 0
    %565 = vmatmul.mubr.bf16.gmra.mxu0 %v438
    %v566 = vpop.f32.mrf.mxu0
    %v567 = vadd.f32 0.0, %v566
    %v568 = vpop.f32.mrf.mxu0
    %v569 = vpop.f32.mrf.mxu0
    %v570 = vadd.f32 0.0, %v569
    %v571 = vpop.f32.mrf.mxu0
    %572 = vmatprep.mubr.bf16.mxu0 0
    %573 = vmatmul.mubr.bf16.gmra.mxu0 %v439
    %v574 = vpop.f32.mrf.mxu0
    %v575 = vadd.f32 0.0, %v574
    %v576 = vpop.f32.mrf.mxu0
    %v577 = vpop.f32.mrf.mxu0
    %v578 = vadd.f32 0.0, %v577
    %v579 = vpop.f32.mrf.mxu0
    %580 = vmatprep.mubr.bf16.mxu0 0
    %581 = vmatmul.mubr.bf16.gmra.mxu0 %v440
    %v582 = vpop.f32.mrf.mxu0
    %v583 = vadd.f32 0.0, %v582
    %v584 = vpop.f32.mrf.mxu0
    %v585 = vpop.f32.mrf.mxu0
    %v586 = vadd.f32 0.0, %v585
    %v587 = vpop.f32.mrf.mxu0
    %588 = vmatprep.mubr.bf16.mxu0 0
    %589 = vmatmul.mubr.bf16.gmra.mxu0 %v441
    %v590 = vpop.f32.mrf.mxu0
    %v591 = vadd.f32 0.0, %v590
    %v592 = vpop.f32.mrf.mxu0
    %v593 = vpop.f32.mrf.mxu0
    %v594 = vadd.f32 0.0, %v593
    %v595 = vpop.f32.mrf.mxu0
    %596 = vmatprep.mubr.bf16.mxu0 0
    %597 = vmatmul.mubr.bf16.gmra.mxu0 %v442
    %v598 = vpop.f32.mrf.mxu0
    %v599 = vadd.f32 0.0, %v598
    %v600 = vpop.f32.mrf.mxu0
    %v601 = vpop.f32.mrf.mxu0
    %v602 = vadd.f32 0.0, %v601
    %v603 = vpop.f32.mrf.mxu0
    %604 = vdwg.mxu0
    %v605 = vadd.f32 %v356, %v543
    %v606 = vadd.f32 %v359, %v546
    %v607 = vadd.f32 %v364, %v551
    %v608 = vadd.f32 %v367, %v554
    %v609 = vadd.f32 %v372, %v559
    %v610 = vadd.f32 %v375, %v562
    %v611 = vadd.f32 %v380, %v567
    %v612 = vadd.f32 %v383, %v570
    %v613 = vadd.f32 %v388, %v575
    %v614 = vadd.f32 %v391, %v578
    %v615 = vadd.f32 %v396, %v583
    %v616 = vadd.f32 %v399, %v586
    %v617 = vadd.f32 %v404, %v591
    %v618 = vadd.f32 %v407, %v594
    %v619 = vadd.f32 %v412, %v599
    %v620 = vadd.f32 %v415, %v602
    %v621 = vld [vmem:[%s2] sm:$0x1]
    %v623 = vlaneseq
    %v624 = vshrl.u32 %v623, 7
    %v625 = vsub.s32 0, %v624
    %v626 = vrot.slane %v621, %v625
    %v628 = vmul.f32 %v605, %v626
    %v629 = vmul.f32 %v606, %v626
    %v630 = vmul.f32 %v607, %v626
    %v631 = vmul.f32 %v608, %v626
    %v632 = vmul.f32 %v609, %v626
    %v633 = vmul.f32 %v610, %v626
    %v634 = vmul.f32 %v611, %v626
    %v635 = vmul.f32 %v612, %v626
    %v636 = vmul.f32 %v613, %v626
    %v637 = vmul.f32 %v614, %v626
    %v638 = vmul.f32 %v615, %v626
    %v639 = vmul.f32 %v616, %v626
    %v640 = vmul.f32 %v617, %v626
    %v641 = vmul.f32 %v618, %v626
    %v642 = vmul.f32 %v619, %v626
    %v643 = vmul.f32 %v620, %v626
    %v644 = vld [vmem:[%s3] sm:$0x1]
    %v646 = vlaneseq
    %v647 = vshrl.u32 %v646, 7
    %v648 = vsub.s32 0, %v647
    %v649 = vrot.slane %v644, %v648
    %v651 = vadd.f32 %v628, %v649
    %v652 = vadd.f32 %v629, %v649
    %v653 = vadd.f32 %v630, %v649
    %v654 = vadd.f32 %v631, %v649
    %v655 = vadd.f32 %v632, %v649
    %v656 = vadd.f32 %v633, %v649
    %v657 = vadd.f32 %v634, %v649
    %v658 = vadd.f32 %v635, %v649
    %v659 = vadd.f32 %v636, %v649
    %v660 = vadd.f32 %v637, %v649
    %v661 = vadd.f32 %v638, %v649
    %v662 = vadd.f32 %v639, %v649
    %v663 = vadd.f32 %v640, %v649
    %v664 = vadd.f32 %v641, %v649
    %v665 = vadd.f32 %v642, %v649
    %v666 = vadd.f32 %v643, %v649
    %v667 = vmax.f32 %v651, 0.0
    %v668 = vmax.f32 %v652, 0.0
    %v669 = vmax.f32 %v653, 0.0
    %v670 = vmax.f32 %v654, 0.0
    %v671 = vmax.f32 %v655, 0.0
    %v672 = vmax.f32 %v656, 0.0
    %v673 = vmax.f32 %v657, 0.0
    %v674 = vmax.f32 %v658, 0.0
    %v675 = vmax.f32 %v659, 0.0
    %v676 = vmax.f32 %v660, 0.0
    %v677 = vmax.f32 %v661, 0.0
    %v678 = vmax.f32 %v662, 0.0
    %v679 = vmax.f32 %v663, 0.0
    %v680 = vmax.f32 %v664, 0.0
    %v681 = vmax.f32 %v665, 0.0
    %v682 = vmax.f32 %v666, 0.0
    %v683 = vmax.f32 %v667, %v668
    %v684 = vmax.f32 %v669, %v670
    %v685 = vmax.f32 %v671, %v672
    %v686 = vmax.f32 %v673, %v674
    %v687 = vmax.f32 %v675, %v676
    %v688 = vmax.f32 %v677, %v678
    %v689 = vmax.f32 %v679, %v680
    %v690 = vmax.f32 %v681, %v682
    %699 = vrot.lane.b32.xlu0 %v683, 120
    %v700 = vpop.permute.xlu0 %699
    %701 = vrot.lane.b32.xlu0 %v684, 120
    %v702 = vpop.permute.xlu0 %701
    %703 = vrot.lane.b32.xlu0 %v685, 120
    %v704 = vpop.permute.xlu0 %703
    %705 = vrot.lane.b32.xlu0 %v686, 120
    %v706 = vpop.permute.xlu0 %705
    %707 = vrot.lane.b32.xlu0 %v687, 120
    %v708 = vpop.permute.xlu0 %707
    %709 = vrot.lane.b32.xlu0 %v688, 120
    %v710 = vpop.permute.xlu0 %709
    %711 = vrot.lane.b32.xlu0 %v689, 120
    %v712 = vpop.permute.xlu0 %711
    %713 = vrot.lane.b32.xlu0 %v690, 120
    %v714 = vpop.permute.xlu0 %713
    %v723 = vmax.f32 %v683, %v700
    %v724 = vmax.f32 %v684, %v702
    %v725 = vmax.f32 %v685, %v704
    %v726 = vmax.f32 %v686, %v706
    %v727 = vmax.f32 %v687, %v708
    %v728 = vmax.f32 %v688, %v710
    %v729 = vmax.f32 %v689, %v712
    %v730 = vmax.f32 %v690, %v714
    %v731 = vpack.c.bf16 %v723, 0.0
    %v732 = vpack.c.bf16 %v725, %v724
    %v733 = vpack.c.bf16 %v727, %v726
    %v734 = vpack.c.bf16 %v729, %v728
    %v735 = vld [vmem:[%s4] sm:$0xf]
    %v736 = vld [vmem:[%s4 + $0x4] sm:$0xf]
    %v737 = vld [vmem:[%s4 + $0x8] sm:$0xf]
    %v738 = vld [vmem:[%s4 + $0xc] sm:$0xf]
    %v739 = vld [vmem:[%s4 + $0x10] sm:$0xf]
    %v740 = vld [vmem:[%s4 + $0x14] sm:$0xf]
    %v741 = vld [vmem:[%s4 + $0x18] sm:$0xf]
    %v742 = vld [vmem:[%s4 + $0x1c] sm:$0xf]
    %v743 = vld [vmem:[%s4 + $0x20] sm:$0xf]
    %v744 = vld [vmem:[%s4 + $0x24] sm:$0xf]
    %v745 = vld [vmem:[%s4 + $0x28] sm:$0xf]
    %v746 = vld [vmem:[%s4 + $0x2c] sm:$0xf]
    %v747 = vld [vmem:[%s4 + $0x30] sm:$0xf]
    %v748 = vld [vmem:[%s4 + $0x34] sm:$0xf]
    %v749 = vld [vmem:[%s4 + $0x38] sm:$0xf]
    %v750 = vpack.c.bf16 %v724, %v723
    %v751 = vpack.c.bf16 %v726, %v725
    %v752 = vpack.c.bf16 %v728, %v727
    %v753 = vpack.c.bf16 %v730, %v729
    %s754 = scalar_lea.vmem %s4, 60
    %v755 = vld [vmem:[%s754] sm:$0xf]
    %v756 = vld [vmem:[%s754 + $0x4] sm:$0xf]
    %v757 = vld [vmem:[%s754 + $0x8] sm:$0xf]
    %v758 = vld [vmem:[%s754 + $0xc] sm:$0xf]
    %v759 = vld [vmem:[%s754 + $0x10] sm:$0xf]
    %v760 = vld [vmem:[%s754 + $0x14] sm:$0xf]
    %v761 = vld [vmem:[%s754 + $0x18] sm:$0xf]
    %v762 = vld [vmem:[%s754 + $0x1c] sm:$0xf]
    %v763 = vld [vmem:[%s754 + $0x20] sm:$0xf]
    %v764 = vld [vmem:[%s754 + $0x24] sm:$0xf]
    %v765 = vld [vmem:[%s754 + $0x28] sm:$0xf]
    %v766 = vld [vmem:[%s754 + $0x2c] sm:$0xf]
    %v767 = vld [vmem:[%s754 + $0x30] sm:$0xf]
    %v768 = vld [vmem:[%s754 + $0x34] sm:$0xf]
    %v769 = vld [vmem:[%s754 + $0x38] sm:$0xf]
    %v785 = vunpack.c.l.b16 %v755
    %v786 = vunpack.c.l.b16 %v756
    %v787 = vunpack.c.l.b16 %v757
    %v788 = vunpack.c.l.b16 %v758
    %v789 = vunpack.c.l.b16 %v759
    %v790 = vunpack.c.l.b16 %v760
    %v791 = vunpack.c.l.b16 %v761
    %v792 = vunpack.c.l.b16 %v762
    %v793 = vunpack.c.l.b16 %v763
    %v794 = vunpack.c.l.b16 %v764
    %v795 = vunpack.c.l.b16 %v765
    %v796 = vunpack.c.l.b16 %v766
    %v797 = vunpack.c.l.b16 %v767
    %v798 = vunpack.c.l.b16 %v768
    %v799 = vunpack.c.l.b16 %v769
    %v800 = vpack.c.b16 %v786, %v785
    %v801 = vpack.c.b16 %v788, %v787
    %v802 = vpack.c.b16 %v790, %v789
    %v803 = vpack.c.b16 %v792, %v791
    %v804 = vpack.c.b16 %v794, %v793
    %v805 = vpack.c.b16 %v796, %v795
    %v806 = vpack.c.b16 %v798, %v797
    %v807 = vpack.c.b16 %v799, %v799
    %vm815 = vcmask 982016
    %v817 = vsel %vm815, %v750, 0
    %v820 = vsel %vm815, %v751, 0
    %v823 = vsel %vm815, %v752, 0
    %v826 = vsel %vm815, %v753, 0
    %vm828 = vcmask 1043456
    %v830 = vsel %vm828, %v807, 0
    %832 = vmatprep.subr.bf16.mxu0 0
    %833 = vmatpush1.bf16.msra.mxu0 %v830
    %834 = vmatprep.subr.bf16.mxu0 0
    %835 = vmatpush1.bf16.msra.mxu0 %v806
    %836 = vmatprep.subr.bf16.mxu0 0
    %837 = vmatpush1.bf16.msra.mxu0 %v805
    %838 = vmatprep.subr.bf16.mxu0 0
    %839 = vmatpush1.bf16.msra.mxu0 %v804
    %840 = vmatprep.subr.bf16.mxu0 0
    %841 = vmatpush1.bf16.msra.mxu0 %v803
    %842 = vmatprep.subr.bf16.mxu0 0
    %843 = vmatpush1.bf16.msra.mxu0 %v802
    %844 = vmatprep.subr.bf16.mxu0 0
    %845 = vmatpush1.bf16.msra.mxu0 %v801
    %846 = vmatprep.subr.bf16.mxu0 0
    %847 = vmatpush1.bf16.msra.mxu0 %v800
    %848 = vmatprep.subr.bf16.mxu0 0
    %849 = vmatpush2.bf16.msra.mxu0 0
    %850 = vmatprep.subr.bf16.mxu0 0
    %851 = vmatpush2.bf16.msra.mxu0 0
    %852 = vmatprep.subr.bf16.mxu0 0
    %853 = vmatpush2.bf16.msra.mxu0 0
    %854 = vmatprep.subr.bf16.mxu0 0
    %855 = vmatpush2.bf16.msra.mxu0 0
    %856 = vmatprep.subr.bf16.mxu0 0
    %857 = vmatpush2.bf16.msra.mxu0 0
    %858 = vmatprep.subr.bf16.mxu0 0
    %859 = vmatpush2.bf16.msra.mxu0 0
    %860 = vmatprep.subr.bf16.mxu0 0
    %861 = vmatpush2.bf16.msra.mxu0 0
    %862 = vmatprep.subr.bf16.mxu0 0
    %863 = vmatpush2.bf16.msra.mxu0 0
    %864 = vmatprep.mubr.bf16.mxu0 0
    %865 = vmatmul.mubr.bf16.gmra.mxu0 %v817
    %v866 = vpop.f32.mrf.mxu0
    %v867 = vadd.f32 0.0, %v866
    %v868 = vpop.f32.mrf.mxu0
    %v869 = vpop.f32.mrf.mxu0
    %v870 = vadd.f32 0.0, %v869
    %v871 = vpop.f32.mrf.mxu0
    %872 = vmatprep.mubr.bf16.mxu0 0
    %873 = vmatmul.mubr.bf16.gmra.mxu0 %v820
    %v874 = vpop.f32.mrf.mxu0
    %v875 = vadd.f32 0.0, %v874
    %v876 = vpop.f32.mrf.mxu0
    %v877 = vpop.f32.mrf.mxu0
    %v878 = vadd.f32 0.0, %v877
    %v879 = vpop.f32.mrf.mxu0
    %880 = vmatprep.mubr.bf16.mxu0 0
    %881 = vmatmul.mubr.bf16.gmra.mxu0 %v823
    %v882 = vpop.f32.mrf.mxu0
    %v883 = vadd.f32 0.0, %v882
    %v884 = vpop.f32.mrf.mxu0
    %v885 = vpop.f32.mrf.mxu0
    %v886 = vadd.f32 0.0, %v885
    %v887 = vpop.f32.mrf.mxu0
    %888 = vmatprep.mubr.bf16.mxu0 0
    %889 = vmatmul.mubr.bf16.gmra.mxu0 %v826
    %v890 = vpop.f32.mrf.mxu0
    %v891 = vadd.f32 0.0, %v890
    %v892 = vpop.f32.mrf.mxu0
    %v893 = vpop.f32.mrf.mxu0
    %v894 = vadd.f32 0.0, %v893
    %v895 = vpop.f32.mrf.mxu0
    %896 = vdwg.mxu0
    %v912 = vunpack.c.l.b16 %v735
    %v913 = vunpack.c.l.b16 %v736
    %v914 = vunpack.c.l.b16 %v737
    %v915 = vunpack.c.l.b16 %v738
    %v916 = vunpack.c.l.b16 %v739
    %v917 = vunpack.c.l.b16 %v740
    %v918 = vunpack.c.l.b16 %v741
    %v919 = vunpack.c.l.b16 %v742
    %v920 = vunpack.c.l.b16 %v743
    %v921 = vunpack.c.l.b16 %v744
    %v922 = vunpack.c.l.b16 %v745
    %v923 = vunpack.c.l.b16 %v746
    %v924 = vunpack.c.l.b16 %v747
    %v925 = vunpack.c.l.b16 %v748
    %v926 = vunpack.c.l.b16 %v749
    %v927 = vpack.c.b16 %v913, %v912
    %v928 = vpack.c.b16 %v915, %v914
    %v929 = vpack.c.b16 %v917, %v916
    %v930 = vpack.c.b16 %v919, %v918
    %v931 = vpack.c.b16 %v921, %v920
    %v932 = vpack.c.b16 %v923, %v922
    %v933 = vpack.c.b16 %v925, %v924
    %v934 = vpack.c.b16 %v926, %v926
    %v943 = vsel %vm815, %v731, 0
    %v946 = vsel %vm815, %v732, 0
    %v949 = vsel %vm815, %v733, 0
    %v952 = vsel %vm815, %v734, 0
    %v955 = vsel %vm828, %v934, 0
    %957 = vmatprep.subr.bf16.mxu0 0
    %958 = vmatpush1.bf16.msra.mxu0 %v955
    %959 = vmatprep.subr.bf16.mxu0 0
    %960 = vmatpush1.bf16.msra.mxu0 %v933
    %961 = vmatprep.subr.bf16.mxu0 0
    %962 = vmatpush1.bf16.msra.mxu0 %v932
    %963 = vmatprep.subr.bf16.mxu0 0
    %964 = vmatpush1.bf16.msra.mxu0 %v931
    %965 = vmatprep.subr.bf16.mxu0 0
    %966 = vmatpush1.bf16.msra.mxu0 %v930
    %967 = vmatprep.subr.bf16.mxu0 0
    %968 = vmatpush1.bf16.msra.mxu0 %v929
    %969 = vmatprep.subr.bf16.mxu0 0
    %970 = vmatpush1.bf16.msra.mxu0 %v928
    %971 = vmatprep.subr.bf16.mxu0 0
    %972 = vmatpush1.bf16.msra.mxu0 %v927
    %973 = vmatprep.subr.bf16.mxu0 0
    %974 = vmatpush2.bf16.msra.mxu0 0
    %975 = vmatprep.subr.bf16.mxu0 0
    %976 = vmatpush2.bf16.msra.mxu0 0
    %977 = vmatprep.subr.bf16.mxu0 0
    %978 = vmatpush2.bf16.msra.mxu0 0
    %979 = vmatprep.subr.bf16.mxu0 0
    %980 = vmatpush2.bf16.msra.mxu0 0
    %981 = vmatprep.subr.bf16.mxu0 0
    %982 = vmatpush2.bf16.msra.mxu0 0
    %983 = vmatprep.subr.bf16.mxu0 0
    %984 = vmatpush2.bf16.msra.mxu0 0
    %985 = vmatprep.subr.bf16.mxu0 0
    %986 = vmatpush2.bf16.msra.mxu0 0
    %987 = vmatprep.subr.bf16.mxu0 0
    %988 = vmatpush2.bf16.msra.mxu0 0
    %989 = vmatprep.mubr.bf16.mxu0 0
    %990 = vmatmul.mubr.bf16.gmra.mxu0 %v943
    %v991 = vpop.f32.mrf.mxu0
    %v992 = vadd.f32 %v867, %v991
    %v993 = vpop.f32.mrf.mxu0
    %v994 = vpop.f32.mrf.mxu0
    %v995 = vadd.f32 %v870, %v994
    %v996 = vpop.f32.mrf.mxu0
    %997 = vmatprep.mubr.bf16.mxu0 0
    %998 = vmatmul.mubr.bf16.gmra.mxu0 %v946
    %v999 = vpop.f32.mrf.mxu0
    %v1000 = vadd.f32 %v875, %v999
    %v1001 = vpop.f32.mrf.mxu0
    %v1002 = vpop.f32.mrf.mxu0
    %v1003 = vadd.f32 %v878, %v1002
    %v1004 = vpop.f32.mrf.mxu0
    %1005 = vmatprep.mubr.bf16.mxu0 0
    %1006 = vmatmul.mubr.bf16.gmra.mxu0 %v949
    %v1007 = vpop.f32.mrf.mxu0
    %v1008 = vadd.f32 %v883, %v1007
    %v1009 = vpop.f32.mrf.mxu0
    %v1010 = vpop.f32.mrf.mxu0
    %v1011 = vadd.f32 %v886, %v1010
    %v1012 = vpop.f32.mrf.mxu0
    %1013 = vmatprep.mubr.bf16.mxu0 0
    %1014 = vmatmul.mubr.bf16.gmra.mxu0 %v952
    %v1015 = vpop.f32.mrf.mxu0
    %v1016 = vadd.f32 %v891, %v1015
    %v1017 = vpop.f32.mrf.mxu0
    %v1018 = vpop.f32.mrf.mxu0
    %v1019 = vadd.f32 %v894, %v1018
    %v1020 = vpop.f32.mrf.mxu0
    %1021 = vdwg.mxu0
    %v1022 = vpack.c.bf16 0.0, %v730
    %s1023 = scalar_lea.vmem %s4, 120
    %v1024 = vld [vmem:[%s1023] sm:$0xf]
    %v1025 = vld [vmem:[%s1023 + $0x4] sm:$0xf]
    %v1026 = vld [vmem:[%s1023 + $0x8] sm:$0xf]
    %v1027 = vld [vmem:[%s1023 + $0xc] sm:$0xf]
    %v1028 = vld [vmem:[%s1023 + $0x10] sm:$0xf]
    %v1029 = vld [vmem:[%s1023 + $0x14] sm:$0xf]
    %v1030 = vld [vmem:[%s1023 + $0x18] sm:$0xf]
    %v1031 = vld [vmem:[%s1023 + $0x1c] sm:$0xf]
    %v1032 = vld [vmem:[%s1023 + $0x20] sm:$0xf]
    %v1033 = vld [vmem:[%s1023 + $0x24] sm:$0xf]
    %v1034 = vld [vmem:[%s1023 + $0x28] sm:$0xf]
    %v1035 = vld [vmem:[%s1023 + $0x2c] sm:$0xf]
    %v1036 = vld [vmem:[%s1023 + $0x30] sm:$0xf]
    %v1037 = vld [vmem:[%s1023 + $0x34] sm:$0xf]
    %v1038 = vld [vmem:[%s1023 + $0x38] sm:$0xf]
    %v1054 = vunpack.c.l.b16 %v1024
    %v1055 = vunpack.c.l.b16 %v1025
    %v1056 = vunpack.c.l.b16 %v1026
    %v1057 = vunpack.c.l.b16 %v1027
    %v1058 = vunpack.c.l.b16 %v1028
    %v1059 = vunpack.c.l.b16 %v1029
    %v1060 = vunpack.c.l.b16 %v1030
    %v1061 = vunpack.c.l.b16 %v1031
    %v1062 = vunpack.c.l.b16 %v1032
    %v1063 = vunpack.c.l.b16 %v1033
    %v1064 = vunpack.c.l.b16 %v1034
    %v1065 = vunpack.c.l.b16 %v1035
    %v1066 = vunpack.c.l.b16 %v1036
    %v1067 = vunpack.c.l.b16 %v1037
    %v1068 = vunpack.c.l.b16 %v1038
    %v1069 = vpack.c.b16 %v1055, %v1054
    %v1070 = vpack.c.b16 %v1057, %v1056
    %v1071 = vpack.c.b16 %v1059, %v1058
    %v1072 = vpack.c.b16 %v1061, %v1060
    %v1073 = vpack.c.b16 %v1063, %v1062
    %v1074 = vpack.c.b16 %v1065, %v1064
    %v1075 = vpack.c.b16 %v1067, %v1066
    %v1076 = vpack.c.b16 %v1068, %v1068
    %v1085 = vsel %vm815, %v1022, 0
    %v1088 = vsel %vm828, %v1076, 0
    %1090 = vmatprep.subr.bf16.mxu0 0
    %1091 = vmatpush1.bf16.msra.mxu0 %v1088
    %1092 = vmatprep.subr.bf16.mxu0 0
    %1093 = vmatpush1.bf16.msra.mxu0 %v1075
    %1094 = vmatprep.subr.bf16.mxu0 0
    %1095 = vmatpush1.bf16.msra.mxu0 %v1074
    %1096 = vmatprep.subr.bf16.mxu0 0
    %1097 = vmatpush1.bf16.msra.mxu0 %v1073
    %1098 = vmatprep.subr.bf16.mxu0 0
    %1099 = vmatpush1.bf16.msra.mxu0 %v1072
    %1100 = vmatprep.subr.bf16.mxu0 0
    %1101 = vmatpush1.bf16.msra.mxu0 %v1071
    %1102 = vmatprep.subr.bf16.mxu0 0
    %1103 = vmatpush1.bf16.msra.mxu0 %v1070
    %1104 = vmatprep.subr.bf16.mxu0 0
    %1105 = vmatpush1.bf16.msra.mxu0 %v1069
    %1106 = vmatprep.subr.bf16.mxu0 0
    %1107 = vmatpush2.bf16.msra.mxu0 0
    %1108 = vmatprep.subr.bf16.mxu0 0
    %1109 = vmatpush2.bf16.msra.mxu0 0
    %1110 = vmatprep.subr.bf16.mxu0 0
    %1111 = vmatpush2.bf16.msra.mxu0 0
    %1112 = vmatprep.subr.bf16.mxu0 0
    %1113 = vmatpush2.bf16.msra.mxu0 0
    %1114 = vmatprep.subr.bf16.mxu0 0
    %1115 = vmatpush2.bf16.msra.mxu0 0
    %1116 = vmatprep.subr.bf16.mxu0 0
    %1117 = vmatpush2.bf16.msra.mxu0 0
    %1118 = vmatprep.subr.bf16.mxu0 0
    %1119 = vmatpush2.bf16.msra.mxu0 0
    %1120 = vmatprep.subr.bf16.mxu0 0
    %1121 = vmatpush2.bf16.msra.mxu0 0
    %1122 = vmatprep.mubr.bf16.mxu0 0
    %1123 = vmatmul.mubr.bf16.gmra.mxu0 %v946
    %v1124 = vpop.f32.mrf.mxu0
    %v1125 = vadd.f32 0.0, %v1124
    %v1126 = vpop.f32.mrf.mxu0
    %v1127 = vpop.f32.mrf.mxu0
    %v1128 = vadd.f32 0.0, %v1127
    %v1129 = vpop.f32.mrf.mxu0
    %1130 = vmatprep.mubr.bf16.mxu0 0
    %1131 = vmatmul.mubr.bf16.gmra.mxu0 %v949
    %v1132 = vpop.f32.mrf.mxu0
    %v1133 = vadd.f32 0.0, %v1132
    %v1134 = vpop.f32.mrf.mxu0
    %v1135 = vpop.f32.mrf.mxu0
    %v1136 = vadd.f32 0.0, %v1135
    %v1137 = vpop.f32.mrf.mxu0
    %1138 = vmatprep.mubr.bf16.mxu0 0
    %1139 = vmatmul.mubr.bf16.gmra.mxu0 %v952
    %v1140 = vpop.f32.mrf.mxu0
    %v1141 = vadd.f32 0.0, %v1140
    %v1142 = vpop.f32.mrf.mxu0
    %v1143 = vpop.f32.mrf.mxu0
    %v1144 = vadd.f32 0.0, %v1143
    %v1145 = vpop.f32.mrf.mxu0
    %1146 = vmatprep.mubr.bf16.mxu0 0
    %1147 = vmatmul.mubr.bf16.gmra.mxu0 %v1085
    %v1148 = vpop.f32.mrf.mxu0
    %v1149 = vadd.f32 0.0, %v1148
    %v1150 = vpop.f32.mrf.mxu0
    %v1151 = vpop.f32.mrf.mxu0
    %v1152 = vadd.f32 0.0, %v1151
    %v1153 = vpop.f32.mrf.mxu0
    %1154 = vdwg.mxu0
    %v1155 = vadd.f32 %v992, %v1125
    %v1156 = vadd.f32 %v995, %v1128
    %v1157 = vadd.f32 %v1000, %v1133
    %v1158 = vadd.f32 %v1003, %v1136
    %v1159 = vadd.f32 %v1008, %v1141
    %v1160 = vadd.f32 %v1011, %v1144
    %v1161 = vadd.f32 %v1016, %v1149
    %v1162 = vadd.f32 %v1019, %v1152
    %v1163 = vld [vmem:[%s5] sm:$0x1]
    %v1165 = vlaneseq
    %v1166 = vshrl.u32 %v1165, 7
    %v1167 = vsub.s32 0, %v1166
    %v1168 = vrot.slane %v1163, %v1167
    %v1170 = vmul.f32 %v1155, %v1168
    %v1171 = vmul.f32 %v1156, %v1168
    %v1172 = vmul.f32 %v1157, %v1168
    %v1173 = vmul.f32 %v1158, %v1168
    %v1174 = vmul.f32 %v1159, %v1168
    %v1175 = vmul.f32 %v1160, %v1168
    %v1176 = vmul.f32 %v1161, %v1168
    %v1177 = vmul.f32 %v1162, %v1168
    %v1178 = vld [vmem:[%s6] sm:$0x1]
    %v1180 = vlaneseq
    %v1181 = vshrl.u32 %v1180, 7
    %v1182 = vsub.s32 0, %v1181
    %v1183 = vrot.slane %v1178, %v1182
    %v1185 = vadd.f32 %v1170, %v1183
    %v1186 = vadd.f32 %v1171, %v1183
    %v1187 = vadd.f32 %v1172, %v1183
    %v1188 = vadd.f32 %v1173, %v1183
    %v1189 = vadd.f32 %v1174, %v1183
    %v1190 = vadd.f32 %v1175, %v1183
    %v1191 = vadd.f32 %v1176, %v1183
    %v1192 = vadd.f32 %v1177, %v1183
    %v1193 = vmax.f32 %v1185, 0.0
    %v1194 = vmax.f32 %v1186, 0.0
    %v1195 = vmax.f32 %v1187, 0.0
    %v1196 = vmax.f32 %v1188, 0.0
    %v1197 = vmax.f32 %v1189, 0.0
    %v1198 = vmax.f32 %v1190, 0.0
    %v1199 = vmax.f32 %v1191, 0.0
    %v1200 = vmax.f32 %v1192, 0.0
    %v1201 = vmax.f32 %v1193, %v1194
    %v1202 = vmax.f32 %v1195, %v1196
    %v1203 = vmax.f32 %v1197, %v1198
    %v1204 = vmax.f32 %v1199, %v1200
    %1209 = vrot.lane.b32.xlu0 %v1201, 120
    %v1210 = vpop.permute.xlu0 %1209
    %1211 = vrot.lane.b32.xlu0 %v1202, 120
    %v1212 = vpop.permute.xlu0 %1211
    %1213 = vrot.lane.b32.xlu0 %v1203, 120
    %v1214 = vpop.permute.xlu0 %1213
    %1215 = vrot.lane.b32.xlu0 %v1204, 120
    %v1216 = vpop.permute.xlu0 %1215
    %v1221 = vmax.f32 %v1201, %v1210
    %v1222 = vmax.f32 %v1202, %v1212
    %v1223 = vmax.f32 %v1203, %v1214
    %v1224 = vmax.f32 %v1204, %v1216
    %v1225 = vpack.c.bf16 %v1221, %v1221
    %v1226 = vld [vmem:[%s7] sm:$0xf]
    %v1227 = vld [vmem:[%s7 + $0x4] sm:$0xf]
    %v1228 = vld [vmem:[%s7 + $0x8] sm:$0xf]
    %v1229 = vld [vmem:[%s7 + $0xc] sm:$0xf]
    %v1230 = vld [vmem:[%s7 + $0x10] sm:$0xf]
    %v1231 = vld [vmem:[%s7 + $0x14] sm:$0xf]
    %v1232 = vld [vmem:[%s7 + $0x18] sm:$0xf]
    %v1233 = vpack.c.bf16 %v1222, %v1222
    %s1234 = scalar_lea.vmem %s7, 28
    %v1235 = vld [vmem:[%s1234] sm:$0xf]
    %v1236 = vld [vmem:[%s1234 + $0x4] sm:$0xf]
    %v1237 = vld [vmem:[%s1234 + $0x8] sm:$0xf]
    %v1238 = vld [vmem:[%s1234 + $0xc] sm:$0xf]
    %v1239 = vld [vmem:[%s1234 + $0x10] sm:$0xf]
    %v1240 = vld [vmem:[%s1234 + $0x14] sm:$0xf]
    %v1241 = vld [vmem:[%s1234 + $0x18] sm:$0xf]
    %v1249 = vunpack.c.l.b16 %v1235
    %v1250 = vunpack.c.l.b16 %v1236
    %v1251 = vunpack.c.l.b16 %v1237
    %v1252 = vunpack.c.l.b16 %v1238
    %v1253 = vunpack.c.l.b16 %v1239
    %v1254 = vunpack.c.l.b16 %v1240
    %v1255 = vunpack.c.l.b16 %v1241
    %v1256 = vpack.c.b16 %v1250, %v1249
    %v1257 = vpack.c.b16 %v1252, %v1251
    %v1258 = vpack.c.b16 %v1254, %v1253
    %v1259 = vpack.c.b16 %v1255, %v1255
    %vm1263 = vcmask 457728
    %v1265 = vsel %vm1263, %v1233, 0
    %v1268 = vsel %vm828, %v1259, 0
    %1270 = vmatprep.subr.bf16.mxu0 0
    %1271 = vmatpush1.bf16.msra.mxu0 0
    %1272 = vmatprep.subr.bf16.mxu0 0
    %1273 = vmatpush1.bf16.msra.mxu0 0
    %1274 = vmatprep.subr.bf16.mxu0 0
    %1275 = vmatpush1.bf16.msra.mxu0 0
    %1276 = vmatprep.subr.bf16.mxu0 0
    %1277 = vmatpush1.bf16.msra.mxu0 0
    %1278 = vmatprep.subr.bf16.mxu0 0
    %1279 = vmatpush1.bf16.msra.mxu0 %v1268
    %1280 = vmatprep.subr.bf16.mxu0 0
    %1281 = vmatpush1.bf16.msra.mxu0 %v1258
    %1282 = vmatprep.subr.bf16.mxu0 0
    %1283 = vmatpush1.bf16.msra.mxu0 %v1257
    %1284 = vmatprep.subr.bf16.mxu0 0
    %1285 = vmatpush1.bf16.msra.mxu0 %v1256
    %1286 = vmatprep.subr.bf16.mxu0 0
    %1287 = vmatpush2.bf16.msra.mxu0 0
    %1288 = vmatprep.subr.bf16.mxu0 0
    %1289 = vmatpush2.bf16.msra.mxu0 0
    %1290 = vmatprep.subr.bf16.mxu0 0
    %1291 = vmatpush2.bf16.msra.mxu0 0
    %1292 = vmatprep.subr.bf16.mxu0 0
    %1293 = vmatpush2.bf16.msra.mxu0 0
    %1294 = vmatprep.subr.bf16.mxu0 0
    %1295 = vmatpush2.bf16.msra.mxu0 0
    %1296 = vmatprep.subr.bf16.mxu0 0
    %1297 = vmatpush2.bf16.msra.mxu0 0
    %1298 = vmatprep.subr.bf16.mxu0 0
    %1299 = vmatpush2.bf16.msra.mxu0 0
    %1300 = vmatprep.subr.bf16.mxu0 0
    %1301 = vmatpush2.bf16.msra.mxu0 0
    %1302 = vmatprep.mubr.bf16.mxu0 0
    %1303 = vmatmul.mubr.bf16.gmra.mxu0 %v1265
    %v1304 = vpop.f32.mrf.mxu0
    %v1305 = vadd.f32 0.0, %v1304
    %v1306 = vpop.f32.mrf.mxu0
    %v1307 = vpop.f32.mrf.mxu0
    %v1308 = vpop.f32.mrf.mxu0
    %1309 = vdwg.mxu0
    %v1317 = vunpack.c.l.b16 %v1226
    %v1318 = vunpack.c.l.b16 %v1227
    %v1319 = vunpack.c.l.b16 %v1228
    %v1320 = vunpack.c.l.b16 %v1229
    %v1321 = vunpack.c.l.b16 %v1230
    %v1322 = vunpack.c.l.b16 %v1231
    %v1323 = vunpack.c.l.b16 %v1232
    %v1324 = vpack.c.b16 %v1318, %v1317
    %v1325 = vpack.c.b16 %v1320, %v1319
    %v1326 = vpack.c.b16 %v1322, %v1321
    %v1327 = vpack.c.b16 %v1323, %v1323
    %v1332 = vsel %vm1263, %v1225, 0
    %v1335 = vsel %vm828, %v1327, 0
    %1337 = vmatprep.subr.bf16.mxu0 0
    %1338 = vmatpush1.bf16.msra.mxu0 0
    %1339 = vmatprep.subr.bf16.mxu0 0
    %1340 = vmatpush1.bf16.msra.mxu0 0
    %1341 = vmatprep.subr.bf16.mxu0 0
    %1342 = vmatpush1.bf16.msra.mxu0 0
    %1343 = vmatprep.subr.bf16.mxu0 0
    %1344 = vmatpush1.bf16.msra.mxu0 0
    %1345 = vmatprep.subr.bf16.mxu0 0
    %1346 = vmatpush1.bf16.msra.mxu0 %v1335
    %1347 = vmatprep.subr.bf16.mxu0 0
    %1348 = vmatpush1.bf16.msra.mxu0 %v1326
    %1349 = vmatprep.subr.bf16.mxu0 0
    %1350 = vmatpush1.bf16.msra.mxu0 %v1325
    %1351 = vmatprep.subr.bf16.mxu0 0
    %1352 = vmatpush1.bf16.msra.mxu0 %v1324
    %1353 = vmatprep.subr.bf16.mxu0 0
    %1354 = vmatpush2.bf16.msra.mxu0 0
    %1355 = vmatprep.subr.bf16.mxu0 0
    %1356 = vmatpush2.bf16.msra.mxu0 0
    %1357 = vmatprep.subr.bf16.mxu0 0
    %1358 = vmatpush2.bf16.msra.mxu0 0
    %1359 = vmatprep.subr.bf16.mxu0 0
    %1360 = vmatpush2.bf16.msra.mxu0 0
    %1361 = vmatprep.subr.bf16.mxu0 0
    %1362 = vmatpush2.bf16.msra.mxu0 0
    %1363 = vmatprep.subr.bf16.mxu0 0
    %1364 = vmatpush2.bf16.msra.mxu0 0
    %1365 = vmatprep.subr.bf16.mxu0 0
    %1366 = vmatpush2.bf16.msra.mxu0 0
    %1367 = vmatprep.subr.bf16.mxu0 0
    %1368 = vmatpush2.bf16.msra.mxu0 0
    %1369 = vmatprep.mubr.bf16.mxu0 0
    %1370 = vmatmul.mubr.bf16.gmra.mxu0 %v1332
    %v1371 = vpop.f32.mrf.mxu0
    %v1372 = vadd.f32 %v1305, %v1371
    %v1373 = vpop.f32.mrf.mxu0
    %v1374 = vpop.f32.mrf.mxu0
    %v1375 = vpop.f32.mrf.mxu0
    %1376 = vdwg.mxu0
    %v1377 = vpack.c.bf16 %v1223, %v1223
    %s1378 = scalar_lea.vmem %s7, 56
    %v1379 = vld [vmem:[%s1378] sm:$0xf]
    %v1380 = vld [vmem:[%s1378 + $0x4] sm:$0xf]
    %v1381 = vld [vmem:[%s1378 + $0x8] sm:$0xf]
    %v1382 = vld [vmem:[%s1378 + $0xc] sm:$0xf]
    %v1383 = vld [vmem:[%s1378 + $0x10] sm:$0xf]
    %v1384 = vld [vmem:[%s1378 + $0x14] sm:$0xf]
    %v1385 = vld [vmem:[%s1378 + $0x18] sm:$0xf]
    %v1393 = vunpack.c.l.b16 %v1379
    %v1394 = vunpack.c.l.b16 %v1380
    %v1395 = vunpack.c.l.b16 %v1381
    %v1396 = vunpack.c.l.b16 %v1382
    %v1397 = vunpack.c.l.b16 %v1383
    %v1398 = vunpack.c.l.b16 %v1384
    %v1399 = vunpack.c.l.b16 %v1385
    %v1400 = vpack.c.b16 %v1394, %v1393
    %v1401 = vpack.c.b16 %v1396, %v1395
    %v1402 = vpack.c.b16 %v1398, %v1397
    %v1403 = vpack.c.b16 %v1399, %v1399
    %v1408 = vsel %vm1263, %v1377, 0
    %v1411 = vsel %vm828, %v1403, 0
    %1413 = vmatprep.subr.bf16.mxu0 0
    %1414 = vmatpush1.bf16.msra.mxu0 0
    %1415 = vmatprep.subr.bf16.mxu0 0
    %1416 = vmatpush1.bf16.msra.mxu0 0
    %1417 = vmatprep.subr.bf16.mxu0 0
    %1418 = vmatpush1.bf16.msra.mxu0 0
    %1419 = vmatprep.subr.bf16.mxu0 0
    %1420 = vmatpush1.bf16.msra.mxu0 0
    %1421 = vmatprep.subr.bf16.mxu0 0
    %1422 = vmatpush1.bf16.msra.mxu0 %v1411
    %1423 = vmatprep.subr.bf16.mxu0 0
    %1424 = vmatpush1.bf16.msra.mxu0 %v1402
    %1425 = vmatprep.subr.bf16.mxu0 0
    %1426 = vmatpush1.bf16.msra.mxu0 %v1401
    %1427 = vmatprep.subr.bf16.mxu0 0
    %1428 = vmatpush1.bf16.msra.mxu0 %v1400
    %1429 = vmatprep.subr.bf16.mxu0 0
    %1430 = vmatpush2.bf16.msra.mxu0 0
    %1431 = vmatprep.subr.bf16.mxu0 0
    %1432 = vmatpush2.bf16.msra.mxu0 0
    %1433 = vmatprep.subr.bf16.mxu0 0
    %1434 = vmatpush2.bf16.msra.mxu0 0
    %1435 = vmatprep.subr.bf16.mxu0 0
    %1436 = vmatpush2.bf16.msra.mxu0 0
    %1437 = vmatprep.subr.bf16.mxu0 0
    %1438 = vmatpush2.bf16.msra.mxu0 0
    %1439 = vmatprep.subr.bf16.mxu0 0
    %1440 = vmatpush2.bf16.msra.mxu0 0
    %1441 = vmatprep.subr.bf16.mxu0 0
    %1442 = vmatpush2.bf16.msra.mxu0 0
    %1443 = vmatprep.subr.bf16.mxu0 0
    %1444 = vmatpush2.bf16.msra.mxu0 0
    %1445 = vmatprep.mubr.bf16.mxu0 0
    %1446 = vmatmul.mubr.bf16.gmra.mxu0 %v1408
    %v1447 = vpop.f32.mrf.mxu0
    %v1448 = vadd.f32 0.0, %v1447
    %v1449 = vpop.f32.mrf.mxu0
    %v1450 = vpop.f32.mrf.mxu0
    %v1451 = vpop.f32.mrf.mxu0
    %1452 = vdwg.mxu0
    %v1453 = vadd.f32 %v1372, %v1448
    %v1454 = vpack.c.bf16 %v1224, %v1224
    %s1455 = scalar_lea.vmem %s7, 84
    %v1456 = vld [vmem:[%s1455] sm:$0xf]
    %v1457 = vld [vmem:[%s1455 + $0x4] sm:$0xf]
    %v1458 = vld [vmem:[%s1455 + $0x8] sm:$0xf]
    %v1459 = vld [vmem:[%s1455 + $0xc] sm:$0xf]
    %v1460 = vld [vmem:[%s1455 + $0x10] sm:$0xf]
    %v1461 = vld [vmem:[%s1455 + $0x14] sm:$0xf]
    %v1462 = vld [vmem:[%s1455 + $0x18] sm:$0xf]
    %v1470 = vunpack.c.l.b16 %v1456
    %v1471 = vunpack.c.l.b16 %v1457
    %v1472 = vunpack.c.l.b16 %v1458
    %v1473 = vunpack.c.l.b16 %v1459
    %v1474 = vunpack.c.l.b16 %v1460
    %v1475 = vunpack.c.l.b16 %v1461
    %v1476 = vunpack.c.l.b16 %v1462
    %v1477 = vpack.c.b16 %v1471, %v1470
    %v1478 = vpack.c.b16 %v1473, %v1472
    %v1479 = vpack.c.b16 %v1475, %v1474
    %v1480 = vpack.c.b16 %v1476, %v1476
    %v1485 = vsel %vm1263, %v1454, 0
    %v1488 = vsel %vm828, %v1480, 0
    %1490 = vmatprep.subr.bf16.mxu0 0
    %1491 = vmatpush1.bf16.msra.mxu0 0
    %1492 = vmatprep.subr.bf16.mxu0 0
    %1493 = vmatpush1.bf16.msra.mxu0 0
    %1494 = vmatprep.subr.bf16.mxu0 0
    %1495 = vmatpush1.bf16.msra.mxu0 0
    %1496 = vmatprep.subr.bf16.mxu0 0
    %1497 = vmatpush1.bf16.msra.mxu0 0
    %1498 = vmatprep.subr.bf16.mxu0 0
    %1499 = vmatpush1.bf16.msra.mxu0 %v1488
    %1500 = vmatprep.subr.bf16.mxu0 0
    %1501 = vmatpush1.bf16.msra.mxu0 %v1479
    %1502 = vmatprep.subr.bf16.mxu0 0
    %1503 = vmatpush1.bf16.msra.mxu0 %v1478
    %1504 = vmatprep.subr.bf16.mxu0 0
    %1505 = vmatpush1.bf16.msra.mxu0 %v1477
    %1506 = vmatprep.subr.bf16.mxu0 0
    %1507 = vmatpush2.bf16.msra.mxu0 0
    %1508 = vmatprep.subr.bf16.mxu0 0
    %1509 = vmatpush2.bf16.msra.mxu0 0
    %1510 = vmatprep.subr.bf16.mxu0 0
    %1511 = vmatpush2.bf16.msra.mxu0 0
    %1512 = vmatprep.subr.bf16.mxu0 0
    %1513 = vmatpush2.bf16.msra.mxu0 0
    %1514 = vmatprep.subr.bf16.mxu0 0
    %1515 = vmatpush2.bf16.msra.mxu0 0
    %1516 = vmatprep.subr.bf16.mxu0 0
    %1517 = vmatpush2.bf16.msra.mxu0 0
    %1518 = vmatprep.subr.bf16.mxu0 0
    %1519 = vmatpush2.bf16.msra.mxu0 0
    %1520 = vmatprep.subr.bf16.mxu0 0
    %1521 = vmatpush2.bf16.msra.mxu0 0
    %1522 = vmatprep.mubr.bf16.mxu0 0
    %1523 = vmatmul.mubr.bf16.gmra.mxu0 %v1485
    %v1524 = vpop.f32.mrf.mxu0
    %v1525 = vadd.f32 0.0, %v1524
    %v1526 = vpop.f32.mrf.mxu0
    %v1527 = vpop.f32.mrf.mxu0
    %v1528 = vpop.f32.mrf.mxu0
    %1529 = vdwg.mxu0
    %v1530 = vadd.f32 %v1453, %v1525
    %v1531 = vld [vmem:[%s8] sm:$0x1]
    %v1533 = vlaneseq
    %v1534 = vshrl.u32 %v1533, 7
    %v1535 = vsub.s32 0, %v1534
    %v1536 = vrot.slane %v1531, %v1535
    %v1538 = vadd.f32 %v1530, %v1536
    %v1539 = vpack.c.bf16 %v1538, %v1538
    %v1540 = vld [vmem:[%s9] sm:$0xf]
    %v1541 = vld [vmem:[%s9 + $0x4] sm:$0xf]
    %v1542 = vld [vmem:[%s9 + $0x8] sm:$0xf]
    %v1543 = vld [vmem:[%s9 + $0xc] sm:$0xf]
    %v1544 = vld [vmem:[%s9 + $0x10] sm:$0xf]
    %v1545 = vld [vmem:[%s9 + $0x14] sm:$0xf]
    %v1546 = vld [vmem:[%s9 + $0x18] sm:$0xf]
    %v1547 = vld [vmem:[%s9 + $0x1c] sm:$0xf]
    %v1548 = vld [vmem:[%s9 + $0x20] sm:$0xf]
    %v1549 = vld [vmem:[%s9 + $0x24] sm:$0xf]
    %v1550 = vld [vmem:[%s9 + $0x28] sm:$0xf]
    %v1551 = vld [vmem:[%s9 + $0x2c] sm:$0xf]
    %v1552 = vld [vmem:[%s9 + $0x30] sm:$0xf]
    %v1553 = vld [vmem:[%s9 + $0x34] sm:$0xf]
    %v1554 = vld [vmem:[%s9 + $0x38] sm:$0xf]
    %v1555 = vld [vmem:[%s9 + $0x3c] sm:$0xf]
    %v1556 = vld [vmem:[%s10] sm:$0x1]
    %v1558 = vlaneseq
    %v1559 = vshrl.u32 %v1558, 7
    %v1560 = vsub.s32 0, %v1559
    %v1561 = vrot.slane %v1556, %v1560
    %v1579 = vunpack.c.l.b16 %v1540
    %v1580 = vunpack.c.l.b16 %v1541
    %v1581 = vunpack.c.l.b16 %v1542
    %v1582 = vunpack.c.l.b16 %v1543
    %v1583 = vunpack.c.l.b16 %v1544
    %v1584 = vunpack.c.l.b16 %v1545
    %v1585 = vunpack.c.l.b16 %v1546
    %v1586 = vunpack.c.l.b16 %v1547
    %v1587 = vunpack.c.l.b16 %v1548
    %v1588 = vunpack.c.l.b16 %v1549
    %v1589 = vunpack.c.l.b16 %v1550
    %v1590 = vunpack.c.l.b16 %v1551
    %v1591 = vunpack.c.l.b16 %v1552
    %v1592 = vunpack.c.l.b16 %v1553
    %v1593 = vunpack.c.l.b16 %v1554
    %v1594 = vunpack.c.l.b16 %v1555
    %v1595 = vpack.c.b16 %v1580, %v1579
    %v1596 = vpack.c.b16 %v1582, %v1581
    %v1597 = vpack.c.b16 %v1584, %v1583
    %v1598 = vpack.c.b16 %v1586, %v1585
    %v1599 = vpack.c.b16 %v1588, %v1587
    %v1600 = vpack.c.b16 %v1590, %v1589
    %v1601 = vpack.c.b16 %v1592, %v1591
    %v1602 = vpack.c.b16 %v1594, %v1593
    %1611 = vmatprep.subr.bf16.mxu0 0
    %1612 = vmatpush1.bf16.msra.mxu0 %v1602
    %1613 = vmatprep.subr.bf16.mxu0 0
    %1614 = vmatpush1.bf16.msra.mxu0 %v1601
    %1615 = vmatprep.subr.bf16.mxu0 0
    %1616 = vmatpush1.bf16.msra.mxu0 %v1600
    %1617 = vmatprep.subr.bf16.mxu0 0
    %1618 = vmatpush1.bf16.msra.mxu0 %v1599
    %1619 = vmatprep.subr.bf16.mxu0 0
    %1620 = vmatpush1.bf16.msra.mxu0 %v1598
    %1621 = vmatprep.subr.bf16.mxu0 0
    %1622 = vmatpush1.bf16.msra.mxu0 %v1597
    %1623 = vmatprep.subr.bf16.mxu0 0
    %1624 = vmatpush1.bf16.msra.mxu0 %v1596
    %1625 = vmatprep.subr.bf16.mxu0 0
    %1626 = vmatpush1.bf16.msra.mxu0 %v1595
    %1627 = vmatprep.subr.bf16.mxu0 0
    %1628 = vmatpush2.bf16.msra.mxu0 0
    %1629 = vmatprep.subr.bf16.mxu0 0
    %1630 = vmatpush2.bf16.msra.mxu0 0
    %1631 = vmatprep.subr.bf16.mxu0 0
    %1632 = vmatpush2.bf16.msra.mxu0 0
    %1633 = vmatprep.subr.bf16.mxu0 0
    %1634 = vmatpush2.bf16.msra.mxu0 0
    %1635 = vmatprep.subr.bf16.mxu0 0
    %1636 = vmatpush2.bf16.msra.mxu0 0
    %1637 = vmatprep.subr.bf16.mxu0 0
    %1638 = vmatpush2.bf16.msra.mxu0 0
    %1639 = vmatprep.subr.bf16.mxu0 0
    %1640 = vmatpush2.bf16.msra.mxu0 0
    %1641 = vmatprep.subr.bf16.mxu0 0
    %1642 = vmatpush2.bf16.msra.mxu0 0
    %1643 = vmatprep.mubr.bf16.mxu0 0
    %1644 = vmatmul.mubr.bf16.gmra.mxu0 %v1539
    %v1645 = vpop.f32.mrf.mxu0
    %v1646 = vadd.f32 %v1561, %v1645
    %v1647 = vpop.f32.mrf.mxu0
    %v1648 = vpop.f32.mrf.mxu0
    %v1649 = vpop.f32.mrf.mxu0
    %1650 = vdwg.mxu0
    %vm1651 = vcmask 39936
    %v1652 = vsel %vm1651, %v1646, -inf
    %1653 = vmax.xlane.f32.xlu0 %v1652
    %v1654 = vpop.xlane.xlu0 %1653
    %v1655 = vsub.f32 %v1646, %v1654
    %v1656 = vmul.f32 %v1655, 1.442695
    %v1657 = vpow.pop %v1656
    %v1658 = vsel %vm1651, %v1657, 0.0
    %1659 = vadd.xlane.f32.xlu0 %v1658
    %v1660 = vpop.xlane.xlu0 %1659
    %v1661 = vlog2.pop %v1660
    %v1662 = vmul.f32 %v1661, 0.6931472
    %v1663 = vsub.f32 %v1655, %v1662
    %v1664 = vld [vmem:[%s11] sm:$0xff]
    %v1665 = vmul.f32 %v1663, %v1664
    %v1666 = vsel %vm1651, %v1665, 0.0
    %1667 = vadd.xlane.f32.xlu0 %v1666
    %v1668 = vpop.xlane.xlu0 %1667
    %v1669 = vrot.slane %v1668, 4
    %v1670 = vadd.f32 %v1668, %v1669
    %v1671 = vrot.slane %v1670, 2
    %v1672 = vadd.f32 %v1670, %v1671
    %v1673 = vrot.slane %v1672, 1
    %v1674 = vadd.f32 %v1672, %v1673
    %s1675 = vtos %v1674
    %s1676 = ssub.f32 0.0, %s1675
    %v1677 = vrcp.pop 4.0
    %s1678 = vtos %v1677
    %s1679 = smul.f32 %s1676, %s1678
    %s1680 = scalar_lea.smem [#allocation2], 0
    %1681 = sst [smem:[%s1680]] %s1679
    %1682 = vmatprep.subr.bf16.mxu0 0
    %1683 = vmatpush1.bf16.xpose.msra.mxu0 0
    %1684 = vmatprep.subr.bf16.mxu0 0
    %1685 = vmatpush1.bf16.xpose.msra.mxu0 0
    %1686 = vmatprep.subr.bf16.mxu0 0
    %1687 = vmatpush1.bf16.xpose.msra.mxu0 0
    %1688 = vmatprep.subr.bf16.mxu0 0
    %1689 = vmatpush1.bf16.xpose.msra.mxu0 0
    %1690 = vmatprep.subr.bf16.mxu0 0
    %1691 = vmatpush1.bf16.xpose.msra.mxu0 0
    %1692 = vmatprep.subr.bf16.mxu0 0
    %1693 = vmatpush1.bf16.xpose.msra.mxu0 0
    %1694 = vmatprep.subr.bf16.mxu0 0
    %1695 = vmatpush1.bf16.xpose.msra.mxu0 0
    %1696 = vmatprep.subr.bf16.mxu0 0
    %1697 = vmatpush1.bf16.xpose.msra.mxu0 %v1539
    %1698 = vmatprep.subr.bf16.mxu0 0
    %1699 = vmatpush2.bf16.xpose.msra.mxu0 0
    %1700 = vmatprep.subr.bf16.mxu0 0
    %1701 = vmatpush2.bf16.xpose.msra.mxu0 0
    %1702 = vmatprep.subr.bf16.mxu0 0
    %1703 = vmatpush2.bf16.xpose.msra.mxu0 0
    %1704 = vmatprep.subr.bf16.mxu0 0
    %1705 = vmatpush2.bf16.xpose.msra.mxu0 0
    %1706 = vmatprep.subr.bf16.mxu0 0
    %1707 = vmatpush2.bf16.xpose.msra.mxu0 0
    %1708 = vmatprep.subr.bf16.mxu0 0
    %1709 = vmatpush2.bf16.xpose.msra.mxu0 0
    %1710 = vmatprep.subr.bf16.mxu0 0
    %1711 = vmatpush2.bf16.xpose.msra.mxu0 0
    %1712 = vmatprep.subr.bf16.mxu0 0
    %1713 = vmatpush2.bf16.xpose.msra.mxu0 0
    %1714 = vmatprep.mubr.bf16.mxu0 0
    %1715 = vmatmul.mubr.bf16.gmra.mxu0 %v1539
    %v1716 = vpop.f32.mrf.mxu0
    %v1717 = vadd.f32 0.0, %v1716
    %v1718 = vpop.f32.mrf.mxu0
    %v1719 = vpop.f32.mrf.mxu0
    %v1720 = vpop.f32.mrf.mxu0
    %1721 = vdwg.mxu0
    %v1722 = vmul.f32 %v1538, %v1538
    %1723 = vadd.xlane.f32.xlu0 %v1722
    %v1724 = vpop.xlane.xlu0 %1723
    %1725 = vmatprep.subr.mxu0 0.0
    %1726 = vmatpush1.xpose.msra.mxu0 0.0
    %1727 = vmatprep.subr.mxu0 0.0
    %1728 = vmatpush1.xpose.msra.mxu0 0.0
    %1729 = vmatprep.subr.mxu0 0.0
    %1730 = vmatpush1.xpose.msra.mxu0 0.0
    %1731 = vmatprep.subr.mxu0 0.0
    %1732 = vmatpush1.xpose.msra.mxu0 0.0
    %1733 = vmatprep.subr.mxu0 0.0
    %1734 = vmatpush1.xpose.msra.mxu0 0.0
    %1735 = vmatprep.subr.mxu0 0.0
    %1736 = vmatpush1.xpose.msra.mxu0 0.0
    %1737 = vmatprep.subr.mxu0 0.0
    %1738 = vmatpush1.xpose.msra.mxu0 0.0
    %1739 = vmatprep.subr.mxu0 0.0
    %1740 = vmatpush1.xpose.msra.mxu0 0.0
    %1741 = vmatprep.subr.mxu0 0.0
    %1742 = vmatpush1.xpose.msra.mxu0 0.0
    %1743 = vmatprep.subr.mxu0 0.0
    %1744 = vmatpush1.xpose.msra.mxu0 0.0
    %1745 = vmatprep.subr.mxu0 0.0
    %1746 = vmatpush1.xpose.msra.mxu0 0.0
    %1747 = vmatprep.subr.mxu0 0.0
    %1748 = vmatpush1.xpose.msra.mxu0 0.0
    %1749 = vmatprep.subr.mxu0 0.0
    %1750 = vmatpush1.xpose.msra.mxu0 0.0
    %1751 = vmatprep.subr.mxu0 0.0
    %1752 = vmatpush1.xpose.msra.mxu0 0.0
    %1753 = vmatprep.subr.mxu0 0.0
    %1754 = vmatpush1.xpose.msra.mxu0 0.0
    %1755 = vmatprep.subr.mxu0 0.0
    %1756 = vmatpush1.xpose.msra.mxu0 %v1722
    %1757 = vmatprep.subr.mxu0 0.0
    %1758 = vmatpush2.xpose.msra.mxu0 0.0
    %1759 = vmatprep.subr.mxu0 0.0
    %1760 = vmatpush2.xpose.msra.mxu0 0.0
    %1761 = vmatprep.subr.mxu0 0.0
    %1762 = vmatpush2.xpose.msra.mxu0 0.0
    %1763 = vmatprep.subr.mxu0 0.0
    %1764 = vmatpush2.xpose.msra.mxu0 0.0
    %1765 = vmatprep.subr.mxu0 0.0
    %1766 = vmatpush2.xpose.msra.mxu0 0.0
    %1767 = vmatprep.subr.mxu0 0.0
    %1768 = vmatpush2.xpose.msra.mxu0 0.0
    %1769 = vmatprep.subr.mxu0 0.0
    %1770 = vmatpush2.xpose.msra.mxu0 0.0
    %1771 = vmatprep.subr.mxu0 0.0
    %1772 = vmatpush2.xpose.msra.mxu0 0.0
    %1773 = vmatprep.subr.mxu0 0.0
    %1774 = vmatpush2.xpose.msra.mxu0 0.0
    %1775 = vmatprep.subr.mxu0 0.0
    %1776 = vmatpush2.xpose.msra.mxu0 0.0
    %1777 = vmatprep.subr.mxu0 0.0
    %1778 = vmatpush2.xpose.msra.mxu0 0.0
    %1779 = vmatprep.subr.mxu0 0.0
    %1780 = vmatpush2.xpose.msra.mxu0 0.0
    %1781 = vmatprep.subr.mxu0 0.0
    %1782 = vmatpush2.xpose.msra.mxu0 0.0
    %1783 = vmatprep.subr.mxu0 0.0
    %1784 = vmatpush2.xpose.msra.mxu0 0.0
    %1785 = vmatprep.subr.mxu0 0.0
    %1786 = vmatpush2.xpose.msra.mxu0 0.0
    %1787 = vmatprep.subr.mxu0 0.0
    %1788 = vmatpush2.xpose.msra.mxu0 0.0
    %1789 = vmatprep.mubr.f32.mxu0 0.0
    %1790 = vmatmul.mubr.f32.gmra.mxu0 1.0
    %v1791 = vpop.f32.mrf.mxu0
    %v1792 = vadd.f32 0.0, %v1791
    %v1793 = vpop.f32.mrf.mxu0
    %1794 = vdwg.mxu0
    %v1795 = vlaneseq
    %v1796 = vshrl.u32 %v1795, 7
    %v1797 = vlaneseq
    %v1798 = vand.u32 %v1797, 127
    %v1799 = vlaneseq
    %v1800 = vshrl.u32 %v1799, 7
    %v1801 = vsub.s32 0, %v1800
    %v1802 = vrot.slane %v1792, %v1801
    %v1803 = vadd.f32 %v1724, %v1802
    %v1804 = vmul.f32 %v1717, 2.0
    %v1805 = vsub.f32 %v1803, %v1804
    %v1806 = vmax.f32 %v1805, 0.0
    %vm1807 = vcmp.eq.s32.totalorder %v1796, %v1798
    %v1808 = vsel %vm1807, 0.0, %v1806
    %vm1809 = vcmask 64512
    %v1810 = vsel %vm1809, %v1808, 0.0
    %1811 = vadd.xlane.f32.xlu0 %v1810
    %v1812 = vpop.xlane.xlu0 %1811
    %v1813 = vrot.slane %v1812, 4
    %v1814 = vadd.f32 %v1812, %v1813
    %v1815 = vrot.slane %v1814, 2
    %v1816 = vadd.f32 %v1814, %v1815
    %v1817 = vrot.slane %v1816, 1
    %v1818 = vadd.f32 %v1816, %v1817
    %s1819 = vtos %v1818
    %v1820 = vrcp.pop 56.0
    %s1821 = vtos %v1820
    %s1822 = smul.f32 %s1819, %s1821
    %v1823 = vrcp.pop 4.0
    %s1824 = vtos %v1823
    %s1825 = smul.f32 %s1822, %s1824
    %v1826 = vstv %s1825
    %v1827 = vrcp.pop %v1826
    %s1828 = vtos %v1827
    %s1829 = ssub.f32 0.0, %s1828
    %v1830 = vstv %s1829
    %v1831 = vmul.f32 %v1808, %v1830
    %v1832 = vmul.f32 %v1831, 1.442695
    %v1833 = vpow.pop %v1832
    %v1834 = vadd.f32 %v1833, 0.0
    %s1835 = smul.f32 %s1829, 0.5
    %v1836 = vstv %s1835
    %v1837 = vmul.f32 %v1808, %v1836
    %v1838 = vmul.f32 %v1837, 1.442695
    %v1839 = vpow.pop %v1838
    %v1840 = vadd.f32 %v1834, %v1839
    %s1841 = smul.f32 %s1829, 0.25
    %v1842 = vstv %s1841
    %v1843 = vmul.f32 %v1808, %v1842
    %v1844 = vmul.f32 %v1843, 1.442695
    %v1845 = vpow.pop %v1844
    %v1846 = vadd.f32 %v1840, %v1845
    %s1847 = smul.f32 %s1829, 0.125
    %v1848 = vstv %s1847
    %v1849 = vmul.f32 %v1808, %v1848
    %v1850 = vmul.f32 %v1849, 1.442695
    %v1851 = vpow.pop %v1850
    %v1852 = vadd.f32 %v1846, %v1851
    %s1853 = smul.f32 %s1829, 0.0625
    %v1854 = vstv %s1853
    %v1855 = vmul.f32 %v1808, %v1854
    %v1856 = vmul.f32 %v1855, 1.442695
    %v1857 = vpow.pop %v1856
    %v1858 = vadd.f32 %v1852, %v1857
    %vm1859 = vcmp.lt.s32.totalorder %v1796, 4
    %vm1860 = vcmp.lt.s32.totalorder %v1798, 4
    %vm1861 = vmxor %vm1859, %vm1860
    %vm1862 = vmxor %vm1861, 1
    %v1863 = vsel %vm1862, 1.0, -1.0
    %v1864 = vmul.f32 %v1858, %v1863
    %v1865 = vsel %vm1809, %v1864, 0.0
    %1866 = vadd.xlane.f32.xlu0 %v1865
    %v1867 = vpop.xlane.xlu0 %1866
    %v1868 = vrot.slane %v1867, 4
    %v1869 = vadd.f32 %v1867, %v1868
    %v1870 = vrot.slane %v1869, 2
    %v1871 = vadd.f32 %v1869, %v1870
    %v1872 = vrot.slane %v1871, 1
    %v1873 = vadd.f32 %v1871, %v1872
    %s1874 = vtos %v1873
    %v1875 = vrcp.pop 16.0
    %s1876 = vtos %v1875
    %s1877 = smul.f32 %s1874, %s1876
    %s1878 = scalar_lea.smem [#allocation4], 0
    %1879 = sst [smem:[%s1878]] %s1877
    // Predicated region
    $region50: #{maml_forward_mark0.1} parent=1 // pred_check
      _
    $region51: #{maml_forward_mark0.1} parent=1 // pred_check_branch
      %1881 = sbr.rel (0) target = $region53
    $region52: #{maml_forward_mark0.1} parent=1 // pred_region
      %s1883 = ssub.s32 16, 16
      %1884 = vsyncadd [#allocation3], %s1883
      %1887 = dma.smem_to_hbm [#allocation2], 16, %s12, [#allocation3]
    $region53: #{maml_forward_mark0.1} parent=1 // pred_fallthru
      _
    // Predicated region
    $region54: #{maml_forward_mark0.1} parent=1 // pred_check
      _
    $region55: #{maml_forward_mark0.1} parent=1 // pred_check_branch
      %1889 = sbr.rel (0) target = $region57
    $region56: #{maml_forward_mark0.1} parent=1 // pred_region
      %s1891 = ssub.s32 16, 16
      %1892 = vsyncadd [#allocation5], %s1891
      %1895 = dma.smem_to_hbm [#allocation4], 16, %s13, [#allocation5]
    $region57: #{maml_forward_mark0.1} parent=1 // pred_fallthru
      _
    // Predicated region
    $region58: #{maml_forward_mark0.1} parent=1 // pred_check
      _
    $region59: #{maml_forward_mark0.1} parent=1 // pred_check_branch
      %1897 = sbr.rel (0) target = $region61
    $region60: #{maml_forward_mark0.1} parent=1 // pred_region
      %1898 = dma.done [#allocation3], 16
    $region61: #{maml_forward_mark0.1} parent=1 // pred_fallthru
      _
    // Predicated region
    $region62: #{maml_forward_mark0.1} parent=1 // pred_check
      _
    $region63: #{maml_forward_mark0.1} parent=1 // pred_check_branch
      %1900 = sbr.rel (0) target = $region65
    $region64: #{maml_forward_mark0.1} parent=1 // pred_region
      %1901 = dma.done [#allocation5], 16
    $region65: #{maml_forward_mark0.1} parent=1 // pred_fallthru
      _
    %1902 = sfence
    %1903 = vsyncpa [#allocation3], 1
    %1904 = vsyncpa [#allocation5], 1

</llo_original>
